<compile_context>
chip_gen: v5e
topology: v5e:2x2
jax: 0.10.0
libtpu: 0.0.40
codegen_flags: <defaults>
</compile_context>

<pallas_src>
import jax
import jax.numpy as jnp
from jax.experimental import pallas as pl
from jax.experimental.pallas import tpu as pltpu


# ----------------------------------------------------------------------------
# Fused kernel: encoder (step 0) + RK4 time loop over the ODE-MLP
# ----------------------------------------------------------------------------
def _make_fused_node_kernel(n_mid):
    """n_mid = number of hidden->hidden Linear layers between first and last.

    Kernel refs (in order):
      t_ref (SMEM), z0_ref, xflat_ref, enc_w, enc_b,
      w1t, w1z, w1x, b1, [w_mid, b_mid]*n_mid, w_last, b_last,
      out_ref, z_scratch, xenc_scratch
    """

    def kernel(*refs):
        (t_ref, z0_ref, xflat_ref, enc_w_ref, enc_b_ref,
         w1t_ref, w1z_ref, w1x_ref, b1_ref) = refs[:9]
        mid_refs = refs[9:9 + 2 * n_mid]
        wlast_ref = refs[9 + 2 * n_mid]
        blast_ref = refs[10 + 2 * n_mid]
        out_ref = refs[11 + 2 * n_mid]
        z_scr = refs[12 + 2 * n_mid]
        xenc_scr = refs[13 + 2 * n_mid]

        s = pl.program_id(0)

        def elu(v):
            # ELU(alpha=1); clamp exp arg so the dead branch never overflows.
            return jnp.where(v > 0, v, jnp.exp(jnp.minimum(v, 0.0)) - 1.0)

        def ode_f(t_scalar, z):
            # First layer via split matmul (replaces torch.cat([t, z, x])).
            h = (t_scalar * w1t_ref[...]
                 + jnp.dot(z, w1z_ref[...], preferred_element_type=jnp.float32)
                 + jnp.dot(xenc_scr[...], w1x_ref[...],
                           preferred_element_type=jnp.float32)
                 + b1_ref[...])
            h = elu(h)
            for li in range(n_mid):
                w = mid_refs[2 * li][...]
                b = mid_refs[2 * li + 1][...]
                h = elu(jnp.dot(h, w, preferred_element_type=jnp.float32) + b)
            # Last layer (no activation); output columns beyond dim_z are 0
            # because w_last / b_last are zero-padded in the wrapper.
            return (jnp.dot(h, wlast_ref[...], preferred_element_type=jnp.float32)
                    + blast_ref[...])

        @pl.when(s == 0)
        def _prologue():
            # Encoder: x_enc = flatten(x) @ W_enc + b_enc, computed once and
            # kept VMEM-resident for all RK4 stages / time steps.
            xenc_scr[...] = (jnp.dot(xflat_ref[...], enc_w_ref[...],
                                     preferred_element_type=jnp.float32)
                             + enc_b_ref[...])
            z_scr[...] = z0_ref[...]

        @pl.when(s > 0)
        def _rk4_step():
            # TODO(synk): adaptive dopri5 has no clean Pallas equivalent;
            # fixed-step RK4 between the requested time points is used instead.
            t0 = t_ref[s - 1]
            t1 = t_ref[s]
            dt = t1 - t0
            z = z_scr[...]
            k1 = ode_f(t0, z)
            k2 = ode_f(t0 + 0.5 * dt, z + 0.5 * dt * k1)
            k3 = ode_f(t0 + 0.5 * dt, z + 0.5 * dt * k2)
            k4 = ode_f(t1, z + dt * k3)
            z_scr[...] = z + (dt / 6.0) * (k1 + 2.0 * k2 + 2.0 * k3 + k4)

        # Store this time point's state (lane-dense (B_pad, 128) tile).
        out_ref[0] = z_scr[...]

    return kernel


# ----------------------------------------------------------------------------
# Parameter construction (deterministic, nn.Linear-style init)
# ----------------------------------------------------------------------------
def init_linear(key, fan_in, fan_out):
    kw, kb = jax.random.split(key)
    bound = 1.0 / float(fan_in) ** 0.5
    w = jax.random.uniform(kw, (fan_in, fan_out), jnp.float32, -bound, bound)
    b = jax.random.uniform(kb, (1, fan_out), jnp.float32, -bound, bound)
    return w, b


def init_params(key, *, in_c, H, W, z_dim, dim_x, dim_z, hidden, n_layers_hidden):
    keys = jax.random.split(key, n_layers_hidden + 2)
    # TODO(synk): the original Encoder class definition was not provided; a
    # synthetic flatten + single Linear(in_c*H*W -> z_dim) encoder is used.
    enc_w, enc_b = init_linear(keys[0], in_c * H * W, z_dim)

    # ODE MLP: Linear(1+dim_x+dim_z, hidden), (n_layers_hidden-1) x
    # Linear(hidden, hidden), Linear(hidden, dim_z)   (matches ODE.__init__).
    layer_dims = [(1 + dim_x + dim_z, hidden)]
    layer_dims += [(hidden, hidden)] * (n_layers_hidden - 1)
    layer_dims += [(hidden, dim_z)]
    ode_ws, ode_bs = [], []
    for i, (fi, fo) in enumerate(layer_dims):
        w, b = init_linear(keys[i + 1], fi, fo)
        ode_ws.append(w)
        ode_bs.append(b)
    return (enc_w, enc_b), (tuple(ode_ws), tuple(ode_bs))


# ----------------------------------------------------------------------------
# NODE_Module forward (single fused pallas_call)
# ----------------------------------------------------------------------------
def node_module_forward(t, z0, x, enc_params, ode_params):
    enc_w, enc_b = enc_params
    ode_ws, ode_bs = ode_params

    B = x.shape[0]
    dim_z = z0.shape[1]
    dim_x = enc_w.shape[1]
    hidden = ode_ws[0].shape[1]
    n_layers = len(ode_ws)
    n_mid = n_layers - 2                      # hidden->hidden layers

    # t = t[0].squeeze(0) -> 1-D vector of T time points.
    t_vec = jnp.squeeze(t[0]).astype(jnp.float32)
    T = int(t_vec.shape[0])

    # Padding for sublane/lane-dense tiles.
    B_pad = max(8, ((B + 7) // 8) * 8)
    DZ_pad = max(128, ((dim_z + 127) // 128) * 128)

    x_flat = x.reshape(B, -1).astype(jnp.float32)
    feat = x_flat.shape[1]

    x_flat_pad = jnp.zeros((B_pad, feat), jnp.float32).at[:B].set(x_flat)
    z0_pad = jnp.zeros((B_pad, DZ_pad), jnp.float32).at[:B, :dim_z].set(
        z0.astype(jnp.float32))

    # Split & pad the first ODE layer (cat order in torch is [t, z, x]).
    w1 = ode_ws[0].astype(jnp.float32)
    w1t = w1[0:1, :]                                            # (1, hidden)
    w1z = jnp.zeros((DZ_pad, hidden), jnp.float32).at[:dim_z].set(
        w1[1:1 + dim_z, :])                                     # (DZ_pad, hidden)
    w1x = w1[1 + dim_z:, :]                                     # (dim_x, hidden)
    b1 = ode_bs[0].astype(jnp.float32)

    # Zero-pad the last layer to a 128-lane output (padded z columns stay 0).
    wlast = jnp.zeros((hidden, DZ_pad), jnp.float32).at[:, :dim_z].set(
        ode_ws[-1].astype(jnp.float32))
    blast = jnp.zeros((1, DZ_pad), jnp.float32).at[:, :dim_z].set(
        ode_bs[-1].astype(jnp.float32))

    mid_args = []
    for i in range(1, n_layers - 1):
        mid_args += [ode_ws[i].astype(jnp.float32), ode_bs[i].astype(jnp.float32)]

    args = ([t_vec, z0_pad, x_flat_pad,
             enc_w.astype(jnp.float32), enc_b.astype(jnp.float32),
             w1t, w1z, w1x, b1] + mid_args + [wlast, blast])

    vmem = pl.BlockSpec(memory_space=pltpu.MemorySpace.VMEM)
    smem = pl.BlockSpec(memory_space=pltpu.MemorySpace.SMEM)
    in_specs = [smem] + [vmem] * (len(args) - 1)

    out = pl.pallas_call(
        _make_fused_node_kernel(n_mid),
        out_shape=jax.ShapeDtypeStruct((T, B_pad, DZ_pad), jnp.float32),
        grid=(T,),
        in_specs=in_specs,
        out_specs=pl.BlockSpec((1, B_pad, DZ_pad), lambda s: (s, 0, 0)),
        scratch_shapes=[
            pltpu.VMEM((B_pad, DZ_pad), jnp.float32),   # z carry
            pltpu.VMEM((B_pad, dim_x), jnp.float32),    # x_enc
        ],
        compiler_params=pltpu.CompilerParams(
            dimension_semantics=("arbitrary",)),        # sequential time carry
    )(*args)

    # (T, B_pad, DZ_pad) -> (B, T, dim_z)   (matches odeint(...).permute(1,0,2))
    traj = out[:, :B, :dim_z]
    return jnp.transpose(traj, (1, 0, 2))


# ----------------------------------------------------------------------------
if __name__ == "__main__":
    # Small shapes consistent with the module.
    B, in_c, H, W = 2, 1, 16, 16
    z_dim = 32                 # encoder output size
    dim_x = z_dim              # ODE conditions on encoded x
    dim_z = 8                  # ODE state size
    hidden = 32
    n_layers_hidden = 3
    T = 5                      # number of time points

    key = jax.random.PRNGKey(0)
    kp, kz, kx = jax.random.split(key, 3)

    enc_params, ode_params = init_params(
        kp, in_c=in_c, H=H, W=W, z_dim=z_dim, dim_x=dim_x,
        dim_z=dim_z, hidden=hidden, n_layers_hidden=n_layers_hidden)

    # t: (B, T) monotonically increasing time points (same per batch row).
    t = jnp.broadcast_to(jnp.linspace(0.0, 1.0, T, dtype=jnp.float32), (B, T))
    z_0 = jax.random.normal(kz, (B, dim_z), dtype=jnp.float32)
    x = jax.random.normal(kx, (B, in_c, H, W), dtype=jnp.float32)

    fwd = jax.jit(node_module_forward)
    z = fwd(t, z_0, x, enc_params, ode_params)
    jax.block_until_ready(z)

    assert z.shape == (B, T, dim_z), z.shape
    assert bool(jnp.all(jnp.isfinite(z)))
    print("KERNEL_OK")
</pallas_src>

<mosaic_0001>
module attributes {stable_mosaic.version = 11 : i64} {
  func.func @kernel(%arg0: i32, %arg1: memref<5xf32, #tpu.memory_space<smem>>, %arg2: memref<8x128xf32, #tpu.memory_space<vmem>>, %arg3: memref<8x256xf32, #tpu.memory_space<vmem>>, %arg4: memref<256x32xf32, #tpu.memory_space<vmem>>, %arg5: memref<1x32xf32, #tpu.memory_space<vmem>>, %arg6: memref<1x32xf32, #tpu.memory_space<vmem>>, %arg7: memref<128x32xf32, #tpu.memory_space<vmem>>, %arg8: memref<32x32xf32, #tpu.memory_space<vmem>>, %arg9: memref<1x32xf32, #tpu.memory_space<vmem>>, %arg10: memref<32x32xf32, #tpu.memory_space<vmem>>, %arg11: memref<1x32xf32, #tpu.memory_space<vmem>>, %arg12: memref<32x32xf32, #tpu.memory_space<vmem>>, %arg13: memref<1x32xf32, #tpu.memory_space<vmem>>, %arg14: memref<32x128xf32, #tpu.memory_space<vmem>>, %arg15: memref<1x128xf32, #tpu.memory_space<vmem>>, %arg16: memref<1x8x128xf32, #tpu.memory_space<vmem>>, %arg17: memref<8x128xf32, #tpu.memory_space<vmem>>, %arg18: memref<8x32xf32, #tpu.memory_space<vmem>>) attributes {dimension_semantics = [#tpu.dimension_semantics<arbitrary>], iteration_bounds = array<i64: 5>, scalar_prefetch = 0 : i64, scratch_operands = 2 : i64, tpu.core_type = #tpu.core_type<tc>, window_params = [{transform_indices = @transform_0, window_bounds = array<i64: 5>}, {pipeline_mode = #tpu.pipeline_mode<synchronous>, transform_indices = @transform_1, window_bounds = array<i64: 8, 128>}, {pipeline_mode = #tpu.pipeline_mode<synchronous>, transform_indices = @transform_2, window_bounds = array<i64: 8, 256>}, {pipeline_mode = #tpu.pipeline_mode<synchronous>, transform_indices = @transform_3, window_bounds = array<i64: 256, 32>}, {pipeline_mode = #tpu.pipeline_mode<synchronous>, transform_indices = @transform_4, window_bounds = array<i64: 1, 32>}, {pipeline_mode = #tpu.pipeline_mode<synchronous>, transform_indices = @transform_5, window_bounds = array<i64: 1, 32>}, {pipeline_mode = #tpu.pipeline_mode<synchronous>, transform_indices = @transform_6, window_bounds = array<i64: 128, 32>}, {pipeline_mode = #tpu.pipeline_mode<synchronous>, transform_indices = @transform_7, window_bounds = array<i64: 32, 32>}, {pipeline_mode = #tpu.pipeline_mode<synchronous>, transform_indices = @transform_8, window_bounds = array<i64: 1, 32>}, {pipeline_mode = #tpu.pipeline_mode<synchronous>, transform_indices = @transform_9, window_bounds = array<i64: 32, 32>}, {pipeline_mode = #tpu.pipeline_mode<synchronous>, transform_indices = @transform_10, window_bounds = array<i64: 1, 32>}, {pipeline_mode = #tpu.pipeline_mode<synchronous>, transform_indices = @transform_11, window_bounds = array<i64: 32, 32>}, {pipeline_mode = #tpu.pipeline_mode<synchronous>, transform_indices = @transform_12, window_bounds = array<i64: 1, 32>}, {pipeline_mode = #tpu.pipeline_mode<synchronous>, transform_indices = @transform_13, window_bounds = array<i64: 32, 128>}, {pipeline_mode = #tpu.pipeline_mode<synchronous>, transform_indices = @transform_14, window_bounds = array<i64: 1, 128>}, {transform_indices = @transform_15, window_bounds = array<i64: 1, 8, 128>}]} {
    %c0_i32 = arith.constant 0 : i32
    %0 = arith.cmpi eq, %arg0, %c0_i32 : i32
    %1 = arith.extui %0 : i1 to i32
    %c0_i32_0 = arith.constant 0 : i32
    %2 = arith.cmpi ne, %1, %c0_i32_0 : i32
    scf.if %2 {
      %c0_7 = arith.constant 0 : index
      %c0_8 = arith.constant 0 : index
      %10 = vector.load %arg3[%c0_7, %c0_8] : memref<8x256xf32, #tpu.memory_space<vmem>>, vector<8x256xf32>
      %c0_9 = arith.constant 0 : index
      %c0_10 = arith.constant 0 : index
      %11 = vector.load %arg4[%c0_9, %c0_10] : memref<256x32xf32, #tpu.memory_space<vmem>>, vector<256x32xf32>
      %cst = arith.constant dense<0.000000e+00> : vector<8x32xf32>
      %12 = tpu.matmul %10, %11, %cst {dimension_numbers = #tpu.dot_dimension_numbers<[1], [0], [0], [1], [0, 0, 1, 1], [], []>} : vector<8x256xf32>, vector<256x32xf32>, vector<8x32xf32> -> vector<8x32xf32>
      %c0_11 = arith.constant 0 : index
      %c0_12 = arith.constant 0 : index
      %13 = vector.load %arg5[%c0_11, %c0_12] : memref<1x32xf32, #tpu.memory_space<vmem>>, vector<1x32xf32>
      %14 = vector.broadcast %13 : vector<1x32xf32> to vector<8x32xf32>
      %15 = arith.addf %12, %14 : vector<8x32xf32>
      %c0_13 = arith.constant 0 : index
      %c0_14 = arith.constant 0 : index
      %16 = vector.load %arg18[%c0_13, %c0_14] : memref<8x32xf32, #tpu.memory_space<vmem>>, vector<8x32xf32>
      tpu.vector_store %arg18[%c0_13, %c0_14], %15 {strides = array<i32>} : memref<8x32xf32, #tpu.memory_space<vmem>>, vector<8x32xf32>,
      %c0_15 = arith.constant 0 : index
      %c0_16 = arith.constant 0 : index
      %17 = vector.load %arg2[%c0_15, %c0_16] : memref<8x128xf32, #tpu.memory_space<vmem>>, vector<8x128xf32>
      %c0_17 = arith.constant 0 : index
      %c0_18 = arith.constant 0 : index
      %18 = vector.load %arg17[%c0_17, %c0_18] : memref<8x128xf32, #tpu.memory_space<vmem>>, vector<8x128xf32>
      tpu.vector_store %arg17[%c0_17, %c0_18], %17 {strides = array<i32>} : memref<8x128xf32, #tpu.memory_space<vmem>>, vector<8x128xf32>,
    } else {
    }
    %c0_i32_1 = arith.constant 0 : i32
    %3 = arith.cmpi sgt, %arg0, %c0_i32_1 : i32
    %4 = arith.extui %3 : i1 to i32
    %c0_i32_2 = arith.constant 0 : i32
    %5 = arith.cmpi ne, %4, %c0_i32_2 : i32
    scf.if %5 {
      %c1_i32 = arith.constant 1 : i32
      %10 = arith.subi %arg0, %c1_i32 : i32
      %11 = arith.index_cast %10 : i32 to index
      %12 = memref.load %arg1[%11] : memref<5xf32, #tpu.memory_space<smem>>
      %13 = arith.index_cast %arg0 : i32 to index
      %14 = memref.load %arg1[%13] : memref<5xf32, #tpu.memory_space<smem>>
      %15 = arith.subf %14, %12 : f32
      %c0_7 = arith.constant 0 : index
      %c0_8 = arith.constant 0 : index
      %16 = vector.load %arg17[%c0_7, %c0_8] : memref<8x128xf32, #tpu.memory_space<vmem>>, vector<8x128xf32>
      %c0_9 = arith.constant 0 : index
      %c0_10 = arith.constant 0 : index
      %17 = vector.load %arg6[%c0_9, %c0_10] : memref<1x32xf32, #tpu.memory_space<vmem>>, vector<1x32xf32>
      %18 = vector.broadcast %12 : f32 to vector<1x32xf32>
      %19 = arith.mulf %18, %17 : vector<1x32xf32>
      %c0_11 = arith.constant 0 : index
      %c0_12 = arith.constant 0 : index
      %20 = vector.load %arg7[%c0_11, %c0_12] : memref<128x32xf32, #tpu.memory_space<vmem>>, vector<128x32xf32>
      %cst = arith.constant dense<0.000000e+00> : vector<8x32xf32>
      %21 = tpu.matmul %16, %20, %cst {dimension_numbers = #tpu.dot_dimension_numbers<[1], [0], [0], [1], [0, 0, 1, 1], [], []>} : vector<8x128xf32>, vector<128x32xf32>, vector<8x32xf32> -> vector<8x32xf32>
      %22 = vector.broadcast %19 : vector<1x32xf32> to vector<8x32xf32>
      %23 = arith.addf %22, %21 : vector<8x32xf32>
      %c0_13 = arith.constant 0 : index
      %c0_14 = arith.constant 0 : index
      %24 = vector.load %arg18[%c0_13, %c0_14] : memref<8x32xf32, #tpu.memory_space<vmem>>, vector<8x32xf32>
      %c0_15 = arith.constant 0 : index
      %c0_16 = arith.constant 0 : index
      %25 = vector.load %arg8[%c0_15, %c0_16] : memref<32x32xf32, #tpu.memory_space<vmem>>, vector<32x32xf32>
      %cst_17 = arith.constant dense<0.000000e+00> : vector<8x32xf32>
      %26 = tpu.matmul %24, %25, %cst_17 {dimension_numbers = #tpu.dot_dimension_numbers<[1], [0], [0], [1], [0, 0, 1, 1], [], []>} : vector<8x32xf32>, vector<32x32xf32>, vector<8x32xf32> -> vector<8x32xf32>
      %27 = arith.addf %23, %26 : vector<8x32xf32>
      %c0_18 = arith.constant 0 : index
      %c0_19 = arith.constant 0 : index
      %28 = vector.load %arg9[%c0_18, %c0_19] : memref<1x32xf32, #tpu.memory_space<vmem>>, vector<1x32xf32>
      %29 = vector.broadcast %28 : vector<1x32xf32> to vector<8x32xf32>
      %30 = arith.addf %27, %29 : vector<8x32xf32>
      %cst_20 = arith.constant 0.000000e+00 : f32
      %31 = vector.broadcast %cst_20 : f32 to vector<8x32xf32>
      %32 = arith.cmpf ogt, %30, %31 : vector<8x32xf32>
      %cst_21 = arith.constant 0.000000e+00 : f32
      %33 = vector.broadcast %cst_21 : f32 to vector<8x32xf32>
      %34 = arith.minimumf %30, %33 : vector<8x32xf32>
      %35 = math.exp %34 : vector<8x32xf32>
      %cst_22 = arith.constant 1.000000e+00 : f32
      %36 = vector.broadcast %cst_22 : f32 to vector<8x32xf32>
      %37 = arith.subf %35, %36 : vector<8x32xf32>
      %38 = arith.select %32, %30, %37 : vector<8x32xi1>, vector<8x32xf32>
      %c0_23 = arith.constant 0 : index
      %c0_24 = arith.constant 0 : index
      %39 = vector.load %arg10[%c0_23, %c0_24] : memref<32x32xf32, #tpu.memory_space<vmem>>, vector<32x32xf32>
      %c0_25 = arith.constant 0 : index
      %c0_26 = arith.constant 0 : index
      %40 = vector.load %arg11[%c0_25, %c0_26] : memref<1x32xf32, #tpu.memory_space<vmem>>, vector<1x32xf32>
      %cst_27 = arith.constant dense<0.000000e+00> : vector<8x32xf32>
      %41 = tpu.matmul %38, %39, %cst_27 {dimension_numbers = #tpu.dot_dimension_numbers<[1], [0], [0], [1], [0, 0, 1, 1], [], []>} : vector<8x32xf32>, vector<32x32xf32>, vector<8x32xf32> -> vector<8x32xf32>
      %42 = vector.broadcast %40 : vector<1x32xf32> to vector<8x32xf32>
      %43 = arith.addf %41, %42 : vector<8x32xf32>
      %cst_28 = arith.constant 0.000000e+00 : f32
      %44 = vector.broadcast %cst_28 : f32 to vector<8x32xf32>
      %45 = arith.cmpf ogt, %43, %44 : vector<8x32xf32>
      %cst_29 = arith.constant 0.000000e+00 : f32
      %46 = vector.broadcast %cst_29 : f32 to vector<8x32xf32>
      %47 = arith.minimumf %43, %46 : vector<8x32xf32>
      %48 = math.exp %47 : vector<8x32xf32>
      %cst_30 = arith.constant 1.000000e+00 : f32
      %49 = vector.broadcast %cst_30 : f32 to vector<8x32xf32>
      %50 = arith.subf %48, %49 : vector<8x32xf32>
      %51 = arith.select %45, %43, %50 : vector<8x32xi1>, vector<8x32xf32>
      %c0_31 = arith.constant 0 : index
      %c0_32 = arith.constant 0 : index
      %52 = vector.load %arg12[%c0_31, %c0_32] : memref<32x32xf32, #tpu.memory_space<vmem>>, vector<32x32xf32>
      %c0_33 = arith.constant 0 : index
      %c0_34 = arith.constant 0 : index
      %53 = vector.load %arg13[%c0_33, %c0_34] : memref<1x32xf32, #tpu.memory_space<vmem>>, vector<1x32xf32>
      %cst_35 = arith.constant dense<0.000000e+00> : vector<8x32xf32>
      %54 = tpu.matmul %51, %52, %cst_35 {dimension_numbers = #tpu.dot_dimension_numbers<[1], [0], [0], [1], [0, 0, 1, 1], [], []>} : vector<8x32xf32>, vector<32x32xf32>, vector<8x32xf32> -> vector<8x32xf32>
      %55 = vector.broadcast %53 : vector<1x32xf32> to vector<8x32xf32>
      %56 = arith.addf %54, %55 : vector<8x32xf32>
      %cst_36 = arith.constant 0.000000e+00 : f32
      %57 = vector.broadcast %cst_36 : f32 to vector<8x32xf32>
      %58 = arith.cmpf ogt, %56, %57 : vector<8x32xf32>
      %cst_37 = arith.constant 0.000000e+00 : f32
      %59 = vector.broadcast %cst_37 : f32 to vector<8x32xf32>
      %60 = arith.minimumf %56, %59 : vector<8x32xf32>
      %61 = math.exp %60 : vector<8x32xf32>
      %cst_38 = arith.constant 1.000000e+00 : f32
      %62 = vector.broadcast %cst_38 : f32 to vector<8x32xf32>
      %63 = arith.subf %61, %62 : vector<8x32xf32>
      %64 = arith.select %58, %56, %63 : vector<8x32xi1>, vector<8x32xf32>
      %c0_39 = arith.constant 0 : index
      %c0_40 = arith.constant 0 : index
      %65 = vector.load %arg14[%c0_39, %c0_40] : memref<32x128xf32, #tpu.memory_space<vmem>>, vector<32x128xf32>
      %cst_41 = arith.constant dense<0.000000e+00> : vector<8x128xf32>
      %66 = tpu.matmul %64, %65, %cst_41 {dimension_numbers = #tpu.dot_dimension_numbers<[1], [0], [0], [1], [0, 0, 1, 1], [], []>} : vector<8x32xf32>, vector<32x128xf32>, vector<8x128xf32> -> vector<8x128xf32>
      %c0_42 = arith.constant 0 : index
      %c0_43 = arith.constant 0 : index
      %67 = vector.load %arg15[%c0_42, %c0_43] : memref<1x128xf32, #tpu.memory_space<vmem>>, vector<1x128xf32>
      %68 = vector.broadcast %67 : vector<1x128xf32> to vector<8x128xf32>
      %69 = arith.addf %66, %68 : vector<8x128xf32>
      %cst_44 = arith.constant 5.000000e-01 : f32
      %70 = arith.mulf %cst_44, %15 : f32
      %71 = arith.addf %12, %70 : f32
      %cst_45 = arith.constant 5.000000e-01 : f32
      %72 = arith.mulf %cst_45, %15 : f32
      %73 = vector.broadcast %72 : f32 to vector<8x128xf32>
      %74 = arith.mulf %73, %69 : vector<8x128xf32>
      %75 = arith.addf %16, %74 : vector<8x128xf32>
      %c0_46 = arith.constant 0 : index
      %c0_47 = arith.constant 0 : index
      %76 = vector.load %arg6[%c0_46, %c0_47] : memref<1x32xf32, #tpu.memory_space<vmem>>, vector<1x32xf32>
      %77 = vector.broadcast %71 : f32 to vector<1x32xf32>
      %78 = arith.mulf %77, %76 : vector<1x32xf32>
      %c0_48 = arith.constant 0 : index
      %c0_49 = arith.constant 0 : index
      %79 = vector.load %arg7[%c0_48, %c0_49] : memref<128x32xf32, #tpu.memory_space<vmem>>, vector<128x32xf32>
      %cst_50 = arith.constant dense<0.000000e+00> : vector<8x32xf32>
      %80 = tpu.matmul %75, %79, %cst_50 {dimension_numbers = #tpu.dot_dimension_numbers<[1], [0], [0], [1], [0, 0, 1, 1], [], []>} : vector<8x128xf32>, vector<128x32xf32>, vector<8x32xf32> -> vector<8x32xf32>
      %81 = vector.broadcast %78 : vector<1x32xf32> to vector<8x32xf32>
      %82 = arith.addf %81, %80 : vector<8x32xf32>
      %c0_51 = arith.constant 0 : index
      %c0_52 = arith.constant 0 : index
      %83 = vector.load %arg18[%c0_51, %c0_52] : memref<8x32xf32, #tpu.memory_space<vmem>>, vector<8x32xf32>
      %c0_53 = arith.constant 0 : index
      %c0_54 = arith.constant 0 : index
      %84 = vector.load %arg8[%c0_53, %c0_54] : memref<32x32xf32, #tpu.memory_space<vmem>>, vector<32x32xf32>
      %cst_55 = arith.constant dense<0.000000e+00> : vector<8x32xf32>
      %85 = tpu.matmul %83, %84, %cst_55 {dimension_numbers = #tpu.dot_dimension_numbers<[1], [0], [0], [1], [0, 0, 1, 1], [], []>} : vector<8x32xf32>, vector<32x32xf32>, vector<8x32xf32> -> vector<8x32xf32>
      %86 = arith.addf %82, %85 : vector<8x32xf32>
      %c0_56 = arith.constant 0 : index
      %c0_57 = arith.constant 0 : index
      %87 = vector.load %arg9[%c0_56, %c0_57] : memref<1x32xf32, #tpu.memory_space<vmem>>, vector<1x32xf32>
      %88 = vector.broadcast %87 : vector<1x32xf32> to vector<8x32xf32>
      %89 = arith.addf %86, %88 : vector<8x32xf32>
      %cst_58 = arith.constant 0.000000e+00 : f32
      %90 = vector.broadcast %cst_58 : f32 to vector<8x32xf32>
      %91 = arith.cmpf ogt, %89, %90 : vector<8x32xf32>
      %cst_59 = arith.constant 0.000000e+00 : f32
      %92 = vector.broadcast %cst_59 : f32 to vector<8x32xf32>
      %93 = arith.minimumf %89, %92 : vector<8x32xf32>
      %94 = math.exp %93 : vector<8x32xf32>
      %cst_60 = arith.constant 1.000000e+00 : f32
      %95 = vector.broadcast %cst_60 : f32 to vector<8x32xf32>
      %96 = arith.subf %94, %95 : vector<8x32xf32>
      %97 = arith.select %91, %89, %96 : vector<8x32xi1>, vector<8x32xf32>
      %c0_61 = arith.constant 0 : index
      %c0_62 = arith.constant 0 : index
      %98 = vector.load %arg10[%c0_61, %c0_62] : memref<32x32xf32, #tpu.memory_space<vmem>>, vector<32x32xf32>
      %c0_63 = arith.constant 0 : index
      %c0_64 = arith.constant 0 : index
      %99 = vector.load %arg11[%c0_63, %c0_64] : memref<1x32xf32, #tpu.memory_space<vmem>>, vector<1x32xf32>
      %cst_65 = arith.constant dense<0.000000e+00> : vector<8x32xf32>
      %100 = tpu.matmul %97, %98, %cst_65 {dimension_numbers = #tpu.dot_dimension_numbers<[1], [0], [0], [1], [0, 0, 1, 1], [], []>} : vector<8x32xf32>, vector<32x32xf32>, vector<8x32xf32> -> vector<8x32xf32>
      %101 = vector.broadcast %99 : vector<1x32xf32> to vector<8x32xf32>
      %102 = arith.addf %100, %101 : vector<8x32xf32>
      %cst_66 = arith.constant 0.000000e+00 : f32
      %103 = vector.broadcast %cst_66 : f32 to vector<8x32xf32>
      %104 = arith.cmpf ogt, %102, %103 : vector<8x32xf32>
      %cst_67 = arith.constant 0.000000e+00 : f32
      %105 = vector.broadcast %cst_67 : f32 to vector<8x32xf32>
      %106 = arith.minimumf %102, %105 : vector<8x32xf32>
      %107 = math.exp %106 : vector<8x32xf32>
      %cst_68 = arith.constant 1.000000e+00 : f32
      %108 = vector.broadcast %cst_68 : f32 to vector<8x32xf32>
      %109 = arith.subf %107, %108 : vector<8x32xf32>
      %110 = arith.select %104, %102, %109 : vector<8x32xi1>, vector<8x32xf32>
      %c0_69 = arith.constant 0 : index
      %c0_70 = arith.constant 0 : index
      %111 = vector.load %arg12[%c0_69, %c0_70] : memref<32x32xf32, #tpu.memory_space<vmem>>, vector<32x32xf32>
      %c0_71 = arith.constant 0 : index
      %c0_72 = arith.constant 0 : index
      %112 = vector.load %arg13[%c0_71, %c0_72] : memref<1x32xf32, #tpu.memory_space<vmem>>, vector<1x32xf32>
      %cst_73 = arith.constant dense<0.000000e+00> : vector<8x32xf32>
      %113 = tpu.matmul %110, %111, %cst_73 {dimension_numbers = #tpu.dot_dimension_numbers<[1], [0], [0], [1], [0, 0, 1, 1], [], []>} : vector<8x32xf32>, vector<32x32xf32>, vector<8x32xf32> -> vector<8x32xf32>
      %114 = vector.broadcast %112 : vector<1x32xf32> to vector<8x32xf32>
      %115 = arith.addf %113, %114 : vector<8x32xf32>
      %cst_74 = arith.constant 0.000000e+00 : f32
      %116 = vector.broadcast %cst_74 : f32 to vector<8x32xf32>
      %117 = arith.cmpf ogt, %115, %116 : vector<8x32xf32>
      %cst_75 = arith.constant 0.000000e+00 : f32
      %118 = vector.broadcast %cst_75 : f32 to vector<8x32xf32>
      %119 = arith.minimumf %115, %118 : vector<8x32xf32>
      %120 = math.exp %119 : vector<8x32xf32>
      %cst_76 = arith.constant 1.000000e+00 : f32
      %121 = vector.broadcast %cst_76 : f32 to vector<8x32xf32>
      %122 = arith.subf %120, %121 : vector<8x32xf32>
      %123 = arith.select %117, %115, %122 : vector<8x32xi1>, vector<8x32xf32>
      %c0_77 = arith.constant 0 : index
      %c0_78 = arith.constant 0 : index
      %124 = vector.load %arg14[%c0_77, %c0_78] : memref<32x128xf32, #tpu.memory_space<vmem>>, vector<32x128xf32>
      %cst_79 = arith.constant dense<0.000000e+00> : vector<8x128xf32>
      %125 = tpu.matmul %123, %124, %cst_79 {dimension_numbers = #tpu.dot_dimension_numbers<[1], [0], [0], [1], [0, 0, 1, 1], [], []>} : vector<8x32xf32>, vector<32x128xf32>, vector<8x128xf32> -> vector<8x128xf32>
      %c0_80 = arith.constant 0 : index
      %c0_81 = arith.constant 0 : index
      %126 = vector.load %arg15[%c0_80, %c0_81] : memref<1x128xf32, #tpu.memory_space<vmem>>, vector<1x128xf32>
      %127 = vector.broadcast %126 : vector<1x128xf32> to vector<8x128xf32>
      %128 = arith.addf %125, %127 : vector<8x128xf32>
      %cst_82 = arith.constant 5.000000e-01 : f32
      %129 = arith.mulf %cst_82, %15 : f32
      %130 = arith.addf %12, %129 : f32
      %cst_83 = arith.constant 5.000000e-01 : f32
      %131 = arith.mulf %cst_83, %15 : f32
      %132 = vector.broadcast %131 : f32 to vector<8x128xf32>
      %133 = arith.mulf %132, %128 : vector<8x128xf32>
      %134 = arith.addf %16, %133 : vector<8x128xf32>
      %c0_84 = arith.constant 0 : index
      %c0_85 = arith.constant 0 : index
      %135 = vector.load %arg6[%c0_84, %c0_85] : memref<1x32xf32, #tpu.memory_space<vmem>>, vector<1x32xf32>
      %136 = vector.broadcast %130 : f32 to vector<1x32xf32>
      %137 = arith.mulf %136, %135 : vector<1x32xf32>
      %c0_86 = arith.constant 0 : index
      %c0_87 = arith.constant 0 : index
      %138 = vector.load %arg7[%c0_86, %c0_87] : memref<128x32xf32, #tpu.memory_space<vmem>>, vector<128x32xf32>
      %cst_88 = arith.constant dense<0.000000e+00> : vector<8x32xf32>
      %139 = tpu.matmul %134, %138, %cst_88 {dimension_numbers = #tpu.dot_dimension_numbers<[1], [0], [0], [1], [0, 0, 1, 1], [], []>} : vector<8x128xf32>, vector<128x32xf32>, vector<8x32xf32> -> vector<8x32xf32>
      %140 = vector.broadcast %137 : vector<1x32xf32> to vector<8x32xf32>
      %141 = arith.addf %140, %139 : vector<8x32xf32>
      %c0_89 = arith.constant 0 : index
      %c0_90 = arith.constant 0 : index
      %142 = vector.load %arg18[%c0_89, %c0_90] : memref<8x32xf32, #tpu.memory_space<vmem>>, vector<8x32xf32>
      %c0_91 = arith.constant 0 : index
      %c0_92 = arith.constant 0 : index
      %143 = vector.load %arg8[%c0_91, %c0_92] : memref<32x32xf32, #tpu.memory_space<vmem>>, vector<32x32xf32>
      %cst_93 = arith.constant dense<0.000000e+00> : vector<8x32xf32>
      %144 = tpu.matmul %142, %143, %cst_93 {dimension_numbers = #tpu.dot_dimension_numbers<[1], [0], [0], [1], [0, 0, 1, 1], [], []>} : vector<8x32xf32>, vector<32x32xf32>, vector<8x32xf32> -> vector<8x32xf32>
      %145 = arith.addf %141, %144 : vector<8x32xf32>
      %c0_94 = arith.constant 0 : index
      %c0_95 = arith.constant 0 : index
      %146 = vector.load %arg9[%c0_94, %c0_95] : memref<1x32xf32, #tpu.memory_space<vmem>>, vector<1x32xf32>
      %147 = vector.broadcast %146 : vector<1x32xf32> to vector<8x32xf32>
      %148 = arith.addf %145, %147 : vector<8x32xf32>
      %cst_96 = arith.constant 0.000000e+00 : f32
      %149 = vector.broadcast %cst_96 : f32 to vector<8x32xf32>
      %150 = arith.cmpf ogt, %148, %149 : vector<8x32xf32>
      %cst_97 = arith.constant 0.000000e+00 : f32
      %151 = vector.broadcast %cst_97 : f32 to vector<8x32xf32>
      %152 = arith.minimumf %148, %151 : vector<8x32xf32>
      %153 = math.exp %152 : vector<8x32xf32>
      %cst_98 = arith.constant 1.000000e+00 : f32
      %154 = vector.broadcast %cst_98 : f32 to vector<8x32xf32>
      %155 = arith.subf %153, %154 : vector<8x32xf32>
      %156 = arith.select %150, %148, %155 : vector<8x32xi1>, vector<8x32xf32>
      %c0_99 = arith.constant 0 : index
      %c0_100 = arith.constant 0 : index
      %157 = vector.load %arg10[%c0_99, %c0_100] : memref<32x32xf32, #tpu.memory_space<vmem>>, vector<32x32xf32>
      %c0_101 = arith.constant 0 : index
      %c0_102 = arith.constant 0 : index
      %158 = vector.load %arg11[%c0_101, %c0_102] : memref<1x32xf32, #tpu.memory_space<vmem>>, vector<1x32xf32>
      %cst_103 = arith.constant dense<0.000000e+00> : vector<8x32xf32>
      %159 = tpu.matmul %156, %157, %cst_103 {dimension_numbers = #tpu.dot_dimension_numbers<[1], [0], [0], [1], [0, 0, 1, 1], [], []>} : vector<8x32xf32>, vector<32x32xf32>, vector<8x32xf32> -> vector<8x32xf32>
      %160 = vector.broadcast %158 : vector<1x32xf32> to vector<8x32xf32>
      %161 = arith.addf %159, %160 : vector<8x32xf32>
      %cst_104 = arith.constant 0.000000e+00 : f32
      %162 = vector.broadcast %cst_104 : f32 to vector<8x32xf32>
      %163 = arith.cmpf ogt, %161, %162 : vector<8x32xf32>
      %cst_105 = arith.constant 0.000000e+00 : f32
      %164 = vector.broadcast %cst_105 : f32 to vector<8x32xf32>
      %165 = arith.minimumf %161, %164 : vector<8x32xf32>
      %166 = math.exp %165 : vector<8x32xf32>
      %cst_106 = arith.constant 1.000000e+00 : f32
      %167 = vector.broadcast %cst_106 : f32 to vector<8x32xf32>
      %168 = arith.subf %166, %167 : vector<8x32xf32>
      %169 = arith.select %163, %161, %168 : vector<8x32xi1>, vector<8x32xf32>
      %c0_107 = arith.constant 0 : index
      %c0_108 = arith.constant 0 : index
      %170 = vector.load %arg12[%c0_107, %c0_108] : memref<32x32xf32, #tpu.memory_space<vmem>>, vector<32x32xf32>
      %c0_109 = arith.constant 0 : index
      %c0_110 = arith.constant 0 : index
      %171 = vector.load %arg13[%c0_109, %c0_110] : memref<1x32xf32, #tpu.memory_space<vmem>>, vector<1x32xf32>
      %cst_111 = arith.constant dense<0.000000e+00> : vector<8x32xf32>
      %172 = tpu.matmul %169, %170, %cst_111 {dimension_numbers = #tpu.dot_dimension_numbers<[1], [0], [0], [1], [0, 0, 1, 1], [], []>} : vector<8x32xf32>, vector<32x32xf32>, vector<8x32xf32> -> vector<8x32xf32>
      %173 = vector.broadcast %171 : vector<1x32xf32> to vector<8x32xf32>
      %174 = arith.addf %172, %173 : vector<8x32xf32>
      %cst_112 = arith.constant 0.000000e+00 : f32
      %175 = vector.broadcast %cst_112 : f32 to vector<8x32xf32>
      %176 = arith.cmpf ogt, %174, %175 : vector<8x32xf32>
      %cst_113 = arith.constant 0.000000e+00 : f32
      %177 = vector.broadcast %cst_113 : f32 to vector<8x32xf32>
      %178 = arith.minimumf %174, %177 : vector<8x32xf32>
      %179 = math.exp %178 : vector<8x32xf32>
      %cst_114 = arith.constant 1.000000e+00 : f32
      %180 = vector.broadcast %cst_114 : f32 to vector<8x32xf32>
      %181 = arith.subf %179, %180 : vector<8x32xf32>
      %182 = arith.select %176, %174, %181 : vector<8x32xi1>, vector<8x32xf32>
      %c0_115 = arith.constant 0 : index
      %c0_116 = arith.constant 0 : index
      %183 = vector.load %arg14[%c0_115, %c0_116] : memref<32x128xf32, #tpu.memory_space<vmem>>, vector<32x128xf32>
      %cst_117 = arith.constant dense<0.000000e+00> : vector<8x128xf32>
      %184 = tpu.matmul %182, %183, %cst_117 {dimension_numbers = #tpu.dot_dimension_numbers<[1], [0], [0], [1], [0, 0, 1, 1], [], []>} : vector<8x32xf32>, vector<32x128xf32>, vector<8x128xf32> -> vector<8x128xf32>
      %c0_118 = arith.constant 0 : index
      %c0_119 = arith.constant 0 : index
      %185 = vector.load %arg15[%c0_118, %c0_119] : memref<1x128xf32, #tpu.memory_space<vmem>>, vector<1x128xf32>
      %186 = vector.broadcast %185 : vector<1x128xf32> to vector<8x128xf32>
      %187 = arith.addf %184, %186 : vector<8x128xf32>
      %188 = vector.broadcast %15 : f32 to vector<8x128xf32>
      %189 = arith.mulf %188, %187 : vector<8x128xf32>
      %190 = arith.addf %16, %189 : vector<8x128xf32>
      %c0_120 = arith.constant 0 : index
      %c0_121 = arith.constant 0 : index
      %191 = vector.load %arg6[%c0_120, %c0_121] : memref<1x32xf32, #tpu.memory_space<vmem>>, vector<1x32xf32>
      %192 = vector.broadcast %14 : f32 to vector<1x32xf32>
      %193 = arith.mulf %192, %191 : vector<1x32xf32>
      %c0_122 = arith.constant 0 : index
      %c0_123 = arith.constant 0 : index
      %194 = vector.load %arg7[%c0_122, %c0_123] : memref<128x32xf32, #tpu.memory_space<vmem>>, vector<128x32xf32>
      %cst_124 = arith.constant dense<0.000000e+00> : vector<8x32xf32>
      %195 = tpu.matmul %190, %194, %cst_124 {dimension_numbers = #tpu.dot_dimension_numbers<[1], [0], [0], [1], [0, 0, 1, 1], [], []>} : vector<8x128xf32>, vector<128x32xf32>, vector<8x32xf32> -> vector<8x32xf32>
      %196 = vector.broadcast %193 : vector<1x32xf32> to vector<8x32xf32>
      %197 = arith.addf %196, %195 : vector<8x32xf32>
      %c0_125 = arith.constant 0 : index
      %c0_126 = arith.constant 0 : index
      %198 = vector.load %arg18[%c0_125, %c0_126] : memref<8x32xf32, #tpu.memory_space<vmem>>, vector<8x32xf32>
      %c0_127 = arith.constant 0 : index
      %c0_128 = arith.constant 0 : index
      %199 = vector.load %arg8[%c0_127, %c0_128] : memref<32x32xf32, #tpu.memory_space<vmem>>, vector<32x32xf32>
      %cst_129 = arith.constant dense<0.000000e+00> : vector<8x32xf32>
      %200 = tpu.matmul %198, %199, %cst_129 {dimension_numbers = #tpu.dot_dimension_numbers<[1], [0], [0], [1], [0, 0, 1, 1], [], []>} : vector<8x32xf32>, vector<32x32xf32>, vector<8x32xf32> -> vector<8x32xf32>
      %201 = arith.addf %197, %200 : vector<8x32xf32>
      %c0_130 = arith.constant 0 : index
      %c0_131 = arith.constant 0 : index
      %202 = vector.load %arg9[%c0_130, %c0_131] : memref<1x32xf32, #tpu.memory_space<vmem>>, vector<1x32xf32>
      %203 = vector.broadcast %202 : vector<1x32xf32> to vector<8x32xf32>
      %204 = arith.addf %201, %203 : vector<8x32xf32>
      %cst_132 = arith.constant 0.000000e+00 : f32
      %205 = vector.broadcast %cst_132 : f32 to vector<8x32xf32>
      %206 = arith.cmpf ogt, %204, %205 : vector<8x32xf32>
      %cst_133 = arith.constant 0.000000e+00 : f32
      %207 = vector.broadcast %cst_133 : f32 to vector<8x32xf32>
      %208 = arith.minimumf %204, %207 : vector<8x32xf32>
      %209 = math.exp %208 : vector<8x32xf32>
      %cst_134 = arith.constant 1.000000e+00 : f32
      %210 = vector.broadcast %cst_134 : f32 to vector<8x32xf32>
      %211 = arith.subf %209, %210 : vector<8x32xf32>
      %212 = arith.select %206, %204, %211 : vector<8x32xi1>, vector<8x32xf32>
      %c0_135 = arith.constant 0 : index
      %c0_136 = arith.constant 0 : index
      %213 = vector.load %arg10[%c0_135, %c0_136] : memref<32x32xf32, #tpu.memory_space<vmem>>, vector<32x32xf32>
      %c0_137 = arith.constant 0 : index
      %c0_138 = arith.constant 0 : index
      %214 = vector.load %arg11[%c0_137, %c0_138] : memref<1x32xf32, #tpu.memory_space<vmem>>, vector<1x32xf32>
      %cst_139 = arith.constant dense<0.000000e+00> : vector<8x32xf32>
      %215 = tpu.matmul %212, %213, %cst_139 {dimension_numbers = #tpu.dot_dimension_numbers<[1], [0], [0], [1], [0, 0, 1, 1], [], []>} : vector<8x32xf32>, vector<32x32xf32>, vector<8x32xf32> -> vector<8x32xf32>
      %216 = vector.broadcast %214 : vector<1x32xf32> to vector<8x32xf32>
      %217 = arith.addf %215, %216 : vector<8x32xf32>
      %cst_140 = arith.constant 0.000000e+00 : f32
      %218 = vector.broadcast %cst_140 : f32 to vector<8x32xf32>
      %219 = arith.cmpf ogt, %217, %218 : vector<8x32xf32>
      %cst_141 = arith.constant 0.000000e+00 : f32
      %220 = vector.broadcast %cst_141 : f32 to vector<8x32xf32>
      %221 = arith.minimumf %217, %220 : vector<8x32xf32>
      %222 = math.exp %221 : vector<8x32xf32>
      %cst_142 = arith.constant 1.000000e+00 : f32
      %223 = vector.broadcast %cst_142 : f32 to vector<8x32xf32>
      %224 = arith.subf %222, %223 : vector<8x32xf32>
      %225 = arith.select %219, %217, %224 : vector<8x32xi1>, vector<8x32xf32>
      %c0_143 = arith.constant 0 : index
      %c0_144 = arith.constant 0 : index
      %226 = vector.load %arg12[%c0_143, %c0_144] : memref<32x32xf32, #tpu.memory_space<vmem>>, vector<32x32xf32>
      %c0_145 = arith.constant 0 : index
      %c0_146 = arith.constant 0 : index
      %227 = vector.load %arg13[%c0_145, %c0_146] : memref<1x32xf32, #tpu.memory_space<vmem>>, vector<1x32xf32>
      %cst_147 = arith.constant dense<0.000000e+00> : vector<8x32xf32>
      %228 = tpu.matmul %225, %226, %cst_147 {dimension_numbers = #tpu.dot_dimension_numbers<[1], [0], [0], [1], [0, 0, 1, 1], [], []>} : vector<8x32xf32>, vector<32x32xf32>, vector<8x32xf32> -> vector<8x32xf32>
      %229 = vector.broadcast %227 : vector<1x32xf32> to vector<8x32xf32>
      %230 = arith.addf %228, %229 : vector<8x32xf32>
      %cst_148 = arith.constant 0.000000e+00 : f32
      %231 = vector.broadcast %cst_148 : f32 to vector<8x32xf32>
      %232 = arith.cmpf ogt, %230, %231 : vector<8x32xf32>
      %cst_149 = arith.constant 0.000000e+00 : f32
      %233 = vector.broadcast %cst_149 : f32 to vector<8x32xf32>
      %234 = arith.minimumf %230, %233 : vector<8x32xf32>
      %235 = math.exp %234 : vector<8x32xf32>
      %cst_150 = arith.constant 1.000000e+00 : f32
      %236 = vector.broadcast %cst_150 : f32 to vector<8x32xf32>
      %237 = arith.subf %235, %236 : vector<8x32xf32>
      %238 = arith.select %232, %230, %237 : vector<8x32xi1>, vector<8x32xf32>
      %c0_151 = arith.constant 0 : index
      %c0_152 = arith.constant 0 : index
      %239 = vector.load %arg14[%c0_151, %c0_152] : memref<32x128xf32, #tpu.memory_space<vmem>>, vector<32x128xf32>
      %cst_153 = arith.constant dense<0.000000e+00> : vector<8x128xf32>
      %240 = tpu.matmul %238, %239, %cst_153 {dimension_numbers = #tpu.dot_dimension_numbers<[1], [0], [0], [1], [0, 0, 1, 1], [], []>} : vector<8x32xf32>, vector<32x128xf32>, vector<8x128xf32> -> vector<8x128xf32>
      %c0_154 = arith.constant 0 : index
      %c0_155 = arith.constant 0 : index
      %241 = vector.load %arg15[%c0_154, %c0_155] : memref<1x128xf32, #tpu.memory_space<vmem>>, vector<1x128xf32>
      %242 = vector.broadcast %241 : vector<1x128xf32> to vector<8x128xf32>
      %243 = arith.addf %240, %242 : vector<8x128xf32>
      %cst_156 = arith.constant 6.000000e+00 : f32
      %244 = arith.divf %15, %cst_156 : f32
      %cst_157 = arith.constant 2.000000e+00 : f32
      %245 = vector.broadcast %cst_157 : f32 to vector<8x128xf32>
      %246 = arith.mulf %245, %128 : vector<8x128xf32>
      %247 = arith.addf %69, %246 : vector<8x128xf32>
      %cst_158 = arith.constant 2.000000e+00 : f32
      %248 = vector.broadcast %cst_158 : f32 to vector<8x128xf32>
      %249 = arith.mulf %248, %187 : vector<8x128xf32>
      %250 = arith.addf %247, %249 : vector<8x128xf32>
      %251 = arith.addf %250, %243 : vector<8x128xf32>
      %252 = vector.broadcast %244 : f32 to vector<8x128xf32>
      %253 = arith.mulf %252, %251 : vector<8x128xf32>
      %254 = arith.addf %16, %253 : vector<8x128xf32>
      %c0_159 = arith.constant 0 : index
      %c0_160 = arith.constant 0 : index
      %255 = vector.load %arg17[%c0_159, %c0_160] : memref<8x128xf32, #tpu.memory_space<vmem>>, vector<8x128xf32>
      tpu.vector_store %arg17[%c0_159, %c0_160], %254 {strides = array<i32>} : memref<8x128xf32, #tpu.memory_space<vmem>>, vector<8x128xf32>,
    } else {
    }
    %c0 = arith.constant 0 : index
    %c0_3 = arith.constant 0 : index
    %6 = vector.load %arg17[%c0, %c0_3] : memref<8x128xf32, #tpu.memory_space<vmem>>, vector<8x128xf32>
    %c0_4 = arith.constant 0 : index
    %c0_5 = arith.constant 0 : index
    %c0_6 = arith.constant 0 : index
    %7 = vector.load %arg16[%c0_4, %c0_5, %c0_6] : memref<1x8x128xf32, #tpu.memory_space<vmem>>, vector<1x8x128xf32>
    %8 = vector.shape_cast %7 : vector<1x8x128xf32> to vector<8x128xf32>
    %9 = vector.shape_cast %6 : vector<8x128xf32> to vector<1x8x128xf32>
    tpu.vector_store %arg16[%c0_4, %c0_5, %c0_6], %9 {strides = array<i32>} : memref<1x8x128xf32, #tpu.memory_space<vmem>>, vector<1x8x128xf32>,
    return
  }
  func.func @transform_0(%arg0: i32) -> i32 {
    %c0_i32 = arith.constant 0 : i32
    %c0_i32_0 = arith.constant 0 : i32
    return %c0_i32 : i32
  }
  func.func @transform_1(%arg0: i32) -> (i32, i32) {
    %c0_i32 = arith.constant 0 : i32
    %c0_i32_0 = arith.constant 0 : i32
    %c0_i32_1 = arith.constant 0 : i32
    return %c0_i32, %c0_i32_0 : i32, i32
  }
  func.func @transform_2(%arg0: i32) -> (i32, i32) {
    %c0_i32 = arith.constant 0 : i32
    %c0_i32_0 = arith.constant 0 : i32
    %c0_i32_1 = arith.constant 0 : i32
    return %c0_i32, %c0_i32_0 : i32, i32
  }
  func.func @transform_3(%arg0: i32) -> (i32, i32) {
    %c0_i32 = arith.constant 0 : i32
    %c0_i32_0 = arith.constant 0 : i32
    %c0_i32_1 = arith.constant 0 : i32
    return %c0_i32, %c0_i32_0 : i32, i32
  }
  func.func @transform_4(%arg0: i32) -> (i32, i32) {
    %c0_i32 = arith.constant 0 : i32
    %c0_i32_0 = arith.constant 0 : i32
    %c0_i32_1 = arith.constant 0 : i32
    return %c0_i32, %c0_i32_0 : i32, i32
  }
  func.func @transform_5(%arg0: i32) -> (i32, i32) {
    %c0_i32 = arith.constant 0 : i32
    %c0_i32_0 = arith.constant 0 : i32
    %c0_i32_1 = arith.constant 0 : i32
    return %c0_i32, %c0_i32_0 : i32, i32
  }
  func.func @transform_6(%arg0: i32) -> (i32, i32) {
    %c0_i32 = arith.constant 0 : i32
    %c0_i32_0 = arith.constant 0 : i32
    %c0_i32_1 = arith.constant 0 : i32
    return %c0_i32, %c0_i32_0 : i32, i32
  }
  func.func @transform_7(%arg0: i32) -> (i32, i32) {
    %c0_i32 = arith.constant 0 : i32
    %c0_i32_0 = arith.constant 0 : i32
    %c0_i32_1 = arith.constant 0 : i32
    return %c0_i32, %c0_i32_0 : i32, i32
  }
  func.func @transform_8(%arg0: i32) -> (i32, i32) {
    %c0_i32 = arith.constant 0 : i32
    %c0_i32_0 = arith.constant 0 : i32
    %c0_i32_1 = arith.constant 0 : i32
    return %c0_i32, %c0_i32_0 : i32, i32
  }
  func.func @transform_9(%arg0: i32) -> (i32, i32) {
    %c0_i32 = arith.constant 0 : i32
    %c0_i32_0 = arith.constant 0 : i32
    %c0_i32_1 = arith.constant 0 : i32
    return %c0_i32, %c0_i32_0 : i32, i32
  }
  func.func @transform_10(%arg0: i32) -> (i32, i32) {
    %c0_i32 = arith.constant 0 : i32
    %c0_i32_0 = arith.constant 0 : i32
    %c0_i32_1 = arith.constant 0 : i32
    return %c0_i32, %c0_i32_0 : i32, i32
  }
  func.func @transform_11(%arg0: i32) -> (i32, i32) {
    %c0_i32 = arith.constant 0 : i32
    %c0_i32_0 = arith.constant 0 : i32
    %c0_i32_1 = arith.constant 0 : i32
    return %c0_i32, %c0_i32_0 : i32, i32
  }
  func.func @transform_12(%arg0: i32) -> (i32, i32) {
    %c0_i32 = arith.constant 0 : i32
    %c0_i32_0 = arith.constant 0 : i32
    %c0_i32_1 = arith.constant 0 : i32
    return %c0_i32, %c0_i32_0 : i32, i32
  }
  func.func @transform_13(%arg0: i32) -> (i32, i32) {
    %c0_i32 = arith.constant 0 : i32
    %c0_i32_0 = arith.constant 0 : i32
    %c0_i32_1 = arith.constant 0 : i32
    return %c0_i32, %c0_i32_0 : i32, i32
  }
  func.func @transform_14(%arg0: i32) -> (i32, i32) {
    %c0_i32 = arith.constant 0 : i32
    %c0_i32_0 = arith.constant 0 : i32
    %c0_i32_1 = arith.constant 0 : i32
    return %c0_i32, %c0_i32_0 : i32, i32
  }
  func.func @transform_15(%arg0: i32) -> (i32, i32, i32) {
    %c0_i32 = arith.constant 0 : i32
    %c0_i32_0 = arith.constant 0 : i32
    %c0_i32_1 = arith.constant 0 : i32
    return %arg0, %c0_i32, %c0_i32_0 : i32, i32, i32
  }
}

</mosaic_0001>

<llo_original>
// kernel: node_module_forward.1
$region0: #{node_module_forward.1}
  #allocation0 [shape = 'u32[]', space=smem, size = 0x4, offset = 0x4, fixed_abs, tag = 'smem constant byte address 0x4 - core index']
  #allocation1 [shape = 'u32[72,128]{1,0:T(1,128)}', space=vmem, size = 0x9000, scoped, tag = 'internal scratch']
  #allocation2 [shape = 'f32[8,128]{1,0:T(8,128)}', space=vmem, size = 0x1000, scoped, tag = 'scratch operand']
  #allocation3 [shape = 'f32[8,32]{1,0:T(8,128)}', space=vmem, size = 0x1000, scoped, tag = 'scratch operand']
  %s0 = inlined_call_operand.vmem [shape: f32[5], index: 0, kind: input, shape index: {}]
  %s1 = inlined_call_operand.vmem [shape: f32[8,128], index: 1, kind: input, shape index: {}]
  %s2 = inlined_call_operand.vmem [shape: f32[8,256], index: 2, kind: input, shape index: {}]
  %s3 = inlined_call_operand.vmem [shape: f32[256,32], index: 3, kind: input, shape index: {}]
  %s4 = inlined_call_operand.vmem [shape: f32[1,32], index: 4, kind: input, shape index: {}]
  %s5 = inlined_call_operand.vmem [shape: f32[1,32], index: 5, kind: input, shape index: {}]
  %s6 = inlined_call_operand.vmem [shape: f32[128,32], index: 6, kind: input, shape index: {}]
  %s7 = inlined_call_operand.vmem [shape: f32[32,32], index: 7, kind: input, shape index: {}]
  %s8 = inlined_call_operand.vmem [shape: f32[1,32], index: 8, kind: input, shape index: {}]
  %s9 = inlined_call_operand.vmem [shape: f32[32,32], index: 9, kind: input, shape index: {}]
  %s10 = inlined_call_operand.vmem [shape: f32[1,32], index: 10, kind: input, shape index: {}]
  %s11 = inlined_call_operand.vmem [shape: f32[32,32], index: 11, kind: input, shape index: {}]
  %s12 = inlined_call_operand.vmem [shape: f32[1,32], index: 12, kind: input, shape index: {}]
  %s13 = inlined_call_operand.vmem [shape: f32[32,128], index: 13, kind: input, shape index: {}]
  %s14 = inlined_call_operand.vmem [shape: f32[1,128], index: 14, kind: input, shape index: {}]
  %s15 = inlined_call_operand.vmem [shape: f32[5,8,128], index: 15, kind: output, shape index: {}]
  %s16 = sld [smem:[#allocation0]]
  $region105: #{node_module_forward.1} parent=0
    _
  %s18 = ssub.s32 1, %s16
  %s19 = scalar_select 0, %s18, %s16
  $region1: #{node_module_forward.1} parent=0
    #allocation4 [shape = 'u8[512]{0}', space=smem, size = 0x200, scoped, tag = 'input window, operand 0, single buffered']
    #allocation5 [shape = 's32[2]{0}', space=sflag, size = 0x8, scoped, tag = 'scoped memory for node_module_forward.1']
    %20 = vsyncpa [#allocation5], 0
    loop: start=0, step=1, limit=7
    $region2: #{node_module_forward.1} parent=1 // loop_pre_header
      _
    $region3: #{node_module_forward.1} parent=1 // loop_header
      %s22 = sphi 0, %s26
      %p23 = scmp.ge.s32.totalorder %s22, 7
      %s30 = sphi 0, %s30
      %s32 = sphi 0, %s30
      %s33 = sphi 0, %s32
      %s47 = sphi 0, %s33
      %s51 = sphi 0, %s51
      %s53 = sphi 0, %s51
      %s54 = sphi 0, %s53
      %s68 = sphi 0, %s54
      %s72 = sphi 0, %s72
      %s74 = sphi 0, %s72
      %s75 = sphi 0, %s74
      %s89 = sphi 0, %s75
      %s93 = sphi 0, %s93
      %s95 = sphi 0, %s93
      %s96 = sphi 0, %s95
      %s110 = sphi 0, %s96
      %s114 = sphi 0, %s114
      %s116 = sphi 0, %s114
      %s117 = sphi 0, %s116
      %s131 = sphi 0, %s117
      %s135 = sphi 0, %s135
      %s137 = sphi 0, %s135
      %s138 = sphi 0, %s137
      %s152 = sphi 0, %s138
      %s156 = sphi 0, %s156
      %s158 = sphi 0, %s156
      %s159 = sphi 0, %s158
      %s173 = sphi 0, %s159
      %s177 = sphi 0, %s177
      %s179 = sphi 0, %s177
      %s180 = sphi 0, %s179
      %s194 = sphi 0, %s180
      %s198 = sphi 0, %s198
      %s200 = sphi 0, %s198
      %s201 = sphi 0, %s200
      %s215 = sphi 0, %s201
      %s219 = sphi 0, %s219
      %s221 = sphi 0, %s219
      %s222 = sphi 0, %s221
      %s236 = sphi 0, %s222
      %s240 = sphi 0, %s240
      %s242 = sphi 0, %s240
      %s243 = sphi 0, %s242
      %s257 = sphi 0, %s243
      %s261 = sphi 0, %s261
      %s263 = sphi 0, %s261
      %s264 = sphi 0, %s263
      %s278 = sphi 0, %s264
      %s282 = sphi 0, %s282
      %s284 = sphi 0, %s282
      %s285 = sphi 0, %s284
      %s299 = sphi 0, %s285
      %s303 = sphi 0, %s303
      %s305 = sphi 0, %s303
      %s306 = sphi 0, %s305
      %s320 = sphi 0, %s306
      %s324 = sphi 0, %s324
      %s326 = sphi 0, %s324
      %s327 = sphi 0, %s326
      %s341 = sphi 0, %s327
      %s347 = sphi 0, %s349
      %s350 = sphi 0, %s347
      %s351 = sphi 0, %s350
      %s367 = sphi 0, %s351
    $region4: #{node_module_forward.1} parent=1 // loop_header_branch
      %25 = sbr.rel (%p23) target = $region8
    $region5: #{node_module_forward.1} parent=1 // loop_body
      %s27 = ssub.s32 %s22, 1
      %s28 = ssub.s32 %s22, 2
      %s29 = sadd.s32 %s22, 1
      %s31 = sadd.s32 %s30, 1
      %p34 = scmp.eq.s32.totalorder %s22, 4
      %p35 = scmp.ne.s32.totalorder %s30, %s32
      %p36 = scmp.eq.s32.totalorder %s22, 0
      %p37 = por %p35, %p36
      %p38 = scmp.ne.s32.totalorder %s30, %s32
      %p39 = scmp.eq.s32.totalorder %s27, 4
      %p40 = por %p38, %p39
      %p41 = scmp.ne.s32.totalorder %s32, %s33
      %p42 = scmp.eq.s32.totalorder %s27, 0
      %p43 = por %p41, %p42
      %p44 = scmp.ne.s32.totalorder %s32, %s33
      %p45 = scmp.eq.s32.totalorder %s28, 4
      %p46 = por %p44, %p45
      %p48 = scmp.ne.s32.totalorder %s33, %s47
      %p49 = scmp.eq.s32.totalorder %s28, 0
      %p50 = por %p48, %p49
      %s52 = sadd.s32 %s51, 1
      %p55 = scmp.eq.s32.totalorder %s22, 4
      %p56 = scmp.ne.s32.totalorder %s51, %s53
      %p57 = scmp.eq.s32.totalorder %s22, 0
      %p58 = por %p56, %p57
      %p59 = scmp.ne.s32.totalorder %s51, %s53
      %p60 = scmp.eq.s32.totalorder %s27, 4
      %p61 = por %p59, %p60
      %p62 = scmp.ne.s32.totalorder %s53, %s54
      %p63 = scmp.eq.s32.totalorder %s27, 0
      %p64 = por %p62, %p63
      %p65 = scmp.ne.s32.totalorder %s53, %s54
      %p66 = scmp.eq.s32.totalorder %s28, 4
      %p67 = por %p65, %p66
      %p69 = scmp.ne.s32.totalorder %s54, %s68
      %p70 = scmp.eq.s32.totalorder %s28, 0
      %p71 = por %p69, %p70
      %s73 = sadd.s32 %s72, 1
      %p76 = scmp.eq.s32.totalorder %s22, 4
      %p77 = scmp.ne.s32.totalorder %s72, %s74
      %p78 = scmp.eq.s32.totalorder %s22, 0
      %p79 = por %p77, %p78
      %p80 = scmp.ne.s32.totalorder %s72, %s74
      %p81 = scmp.eq.s32.totalorder %s27, 4
      %p82 = por %p80, %p81
      %p83 = scmp.ne.s32.totalorder %s74, %s75
      %p84 = scmp.eq.s32.totalorder %s27, 0
      %p85 = por %p83, %p84
      %p86 = scmp.ne.s32.totalorder %s74, %s75
      %p87 = scmp.eq.s32.totalorder %s28, 4
      %p88 = por %p86, %p87
      %p90 = scmp.ne.s32.totalorder %s75, %s89
      %p91 = scmp.eq.s32.totalorder %s28, 0
      %p92 = por %p90, %p91
      %s94 = sadd.s32 %s93, 1
      %p97 = scmp.eq.s32.totalorder %s22, 4
      %p98 = scmp.ne.s32.totalorder %s93, %s95
      %p99 = scmp.eq.s32.totalorder %s22, 0
      %p100 = por %p98, %p99
      %p101 = scmp.ne.s32.totalorder %s93, %s95
      %p102 = scmp.eq.s32.totalorder %s27, 4
      %p103 = por %p101, %p102
      %p104 = scmp.ne.s32.totalorder %s95, %s96
      %p105 = scmp.eq.s32.totalorder %s27, 0
      %p106 = por %p104, %p105
      %p107 = scmp.ne.s32.totalorder %s95, %s96
      %p108 = scmp.eq.s32.totalorder %s28, 4
      %p109 = por %p107, %p108
      %p111 = scmp.ne.s32.totalorder %s96, %s110
      %p112 = scmp.eq.s32.totalorder %s28, 0
      %p113 = por %p111, %p112
      %s115 = sadd.s32 %s114, 1
      %p118 = scmp.eq.s32.totalorder %s22, 4
      %p119 = scmp.ne.s32.totalorder %s114, %s116
      %p120 = scmp.eq.s32.totalorder %s22, 0
      %p121 = por %p119, %p120
      %p122 = scmp.ne.s32.totalorder %s114, %s116
      %p123 = scmp.eq.s32.totalorder %s27, 4
      %p124 = por %p122, %p123
      %p125 = scmp.ne.s32.totalorder %s116, %s117
      %p126 = scmp.eq.s32.totalorder %s27, 0
      %p127 = por %p125, %p126
      %p128 = scmp.ne.s32.totalorder %s116, %s117
      %p129 = scmp.eq.s32.totalorder %s28, 4
      %p130 = por %p128, %p129
      %p132 = scmp.ne.s32.totalorder %s117, %s131
      %p133 = scmp.eq.s32.totalorder %s28, 0
      %p134 = por %p132, %p133
      %s136 = sadd.s32 %s135, 1
      %p139 = scmp.eq.s32.totalorder %s22, 4
      %p140 = scmp.ne.s32.totalorder %s135, %s137
      %p141 = scmp.eq.s32.totalorder %s22, 0
      %p142 = por %p140, %p141
      %p143 = scmp.ne.s32.totalorder %s135, %s137
      %p144 = scmp.eq.s32.totalorder %s27, 4
      %p145 = por %p143, %p144
      %p146 = scmp.ne.s32.totalorder %s137, %s138
      %p147 = scmp.eq.s32.totalorder %s27, 0
      %p148 = por %p146, %p147
      %p149 = scmp.ne.s32.totalorder %s137, %s138
      %p150 = scmp.eq.s32.totalorder %s28, 4
      %p151 = por %p149, %p150
      %p153 = scmp.ne.s32.totalorder %s138, %s152
      %p154 = scmp.eq.s32.totalorder %s28, 0
      %p155 = por %p153, %p154
      %s157 = sadd.s32 %s156, 1
      %p160 = scmp.eq.s32.totalorder %s22, 4
      %p161 = scmp.ne.s32.totalorder %s156, %s158
      %p162 = scmp.eq.s32.totalorder %s22, 0
      %p163 = por %p161, %p162
      %p164 = scmp.ne.s32.totalorder %s156, %s158
      %p165 = scmp.eq.s32.totalorder %s27, 4
      %p166 = por %p164, %p165
      %p167 = scmp.ne.s32.totalorder %s158, %s159
      %p168 = scmp.eq.s32.totalorder %s27, 0
      %p169 = por %p167, %p168
      %p170 = scmp.ne.s32.totalorder %s158, %s159
      %p171 = scmp.eq.s32.totalorder %s28, 4
      %p172 = por %p170, %p171
      %p174 = scmp.ne.s32.totalorder %s159, %s173
      %p175 = scmp.eq.s32.totalorder %s28, 0
      %p176 = por %p174, %p175
      %s178 = sadd.s32 %s177, 1
      %p181 = scmp.eq.s32.totalorder %s22, 4
      %p182 = scmp.ne.s32.totalorder %s177, %s179
      %p183 = scmp.eq.s32.totalorder %s22, 0
      %p184 = por %p182, %p183
      %p185 = scmp.ne.s32.totalorder %s177, %s179
      %p186 = scmp.eq.s32.totalorder %s27, 4
      %p187 = por %p185, %p186
      %p188 = scmp.ne.s32.totalorder %s179, %s180
      %p189 = scmp.eq.s32.totalorder %s27, 0
      %p190 = por %p188, %p189
      %p191 = scmp.ne.s32.totalorder %s179, %s180
      %p192 = scmp.eq.s32.totalorder %s28, 4
      %p193 = por %p191, %p192
      %p195 = scmp.ne.s32.totalorder %s180, %s194
      %p196 = scmp.eq.s32.totalorder %s28, 0
      %p197 = por %p195, %p196
      %s199 = sadd.s32 %s198, 1
      %p202 = scmp.eq.s32.totalorder %s22, 4
      %p203 = scmp.ne.s32.totalorder %s198, %s200
      %p204 = scmp.eq.s32.totalorder %s22, 0
      %p205 = por %p203, %p204
      %p206 = scmp.ne.s32.totalorder %s198, %s200
      %p207 = scmp.eq.s32.totalorder %s27, 4
      %p208 = por %p206, %p207
      %p209 = scmp.ne.s32.totalorder %s200, %s201
      %p210 = scmp.eq.s32.totalorder %s27, 0
      %p211 = por %p209, %p210
      %p212 = scmp.ne.s32.totalorder %s200, %s201
      %p213 = scmp.eq.s32.totalorder %s28, 4
      %p214 = por %p212, %p213
      %p216 = scmp.ne.s32.totalorder %s201, %s215
      %p217 = scmp.eq.s32.totalorder %s28, 0
      %p218 = por %p216, %p217
      %s220 = sadd.s32 %s219, 1
      %p223 = scmp.eq.s32.totalorder %s22, 4
      %p224 = scmp.ne.s32.totalorder %s219, %s221
      %p225 = scmp.eq.s32.totalorder %s22, 0
      %p226 = por %p224, %p225
      %p227 = scmp.ne.s32.totalorder %s219, %s221
      %p228 = scmp.eq.s32.totalorder %s27, 4
      %p229 = por %p227, %p228
      %p230 = scmp.ne.s32.totalorder %s221, %s222
      %p231 = scmp.eq.s32.totalorder %s27, 0
      %p232 = por %p230, %p231
      %p233 = scmp.ne.s32.totalorder %s221, %s222
      %p234 = scmp.eq.s32.totalorder %s28, 4
      %p235 = por %p233, %p234
      %p237 = scmp.ne.s32.totalorder %s222, %s236
      %p238 = scmp.eq.s32.totalorder %s28, 0
      %p239 = por %p237, %p238
      %s241 = sadd.s32 %s240, 1
      %p244 = scmp.eq.s32.totalorder %s22, 4
      %p245 = scmp.ne.s32.totalorder %s240, %s242
      %p246 = scmp.eq.s32.totalorder %s22, 0
      %p247 = por %p245, %p246
      %p248 = scmp.ne.s32.totalorder %s240, %s242
      %p249 = scmp.eq.s32.totalorder %s27, 4
      %p250 = por %p248, %p249
      %p251 = scmp.ne.s32.totalorder %s242, %s243
      %p252 = scmp.eq.s32.totalorder %s27, 0
      %p253 = por %p251, %p252
      %p254 = scmp.ne.s32.totalorder %s242, %s243
      %p255 = scmp.eq.s32.totalorder %s28, 4
      %p256 = por %p254, %p255
      %p258 = scmp.ne.s32.totalorder %s243, %s257
      %p259 = scmp.eq.s32.totalorder %s28, 0
      %p260 = por %p258, %p259
      %s262 = sadd.s32 %s261, 1
      %p265 = scmp.eq.s32.totalorder %s22, 4
      %p266 = scmp.ne.s32.totalorder %s261, %s263
      %p267 = scmp.eq.s32.totalorder %s22, 0
      %p268 = por %p266, %p267
      %p269 = scmp.ne.s32.totalorder %s261, %s263
      %p270 = scmp.eq.s32.totalorder %s27, 4
      %p271 = por %p269, %p270
      %p272 = scmp.ne.s32.totalorder %s263, %s264
      %p273 = scmp.eq.s32.totalorder %s27, 0
      %p274 = por %p272, %p273
      %p275 = scmp.ne.s32.totalorder %s263, %s264
      %p276 = scmp.eq.s32.totalorder %s28, 4
      %p277 = por %p275, %p276
      %p279 = scmp.ne.s32.totalorder %s264, %s278
      %p280 = scmp.eq.s32.totalorder %s28, 0
      %p281 = por %p279, %p280
      %s283 = sadd.s32 %s282, 1
      %p286 = scmp.eq.s32.totalorder %s22, 4
      %p287 = scmp.ne.s32.totalorder %s282, %s284
      %p288 = scmp.eq.s32.totalorder %s22, 0
      %p289 = por %p287, %p288
      %p290 = scmp.ne.s32.totalorder %s282, %s284
      %p291 = scmp.eq.s32.totalorder %s27, 4
      %p292 = por %p290, %p291
      %p293 = scmp.ne.s32.totalorder %s284, %s285
      %p294 = scmp.eq.s32.totalorder %s27, 0
      %p295 = por %p293, %p294
      %p296 = scmp.ne.s32.totalorder %s284, %s285
      %p297 = scmp.eq.s32.totalorder %s28, 4
      %p298 = por %p296, %p297
      %p300 = scmp.ne.s32.totalorder %s285, %s299
      %p301 = scmp.eq.s32.totalorder %s28, 0
      %p302 = por %p300, %p301
      %s304 = sadd.s32 %s303, 1
      %p307 = scmp.eq.s32.totalorder %s22, 4
      %p308 = scmp.ne.s32.totalorder %s303, %s305
      %p309 = scmp.eq.s32.totalorder %s22, 0
      %p310 = por %p308, %p309
      %p311 = scmp.ne.s32.totalorder %s303, %s305
      %p312 = scmp.eq.s32.totalorder %s27, 4
      %p313 = por %p311, %p312
      %p314 = scmp.ne.s32.totalorder %s305, %s306
      %p315 = scmp.eq.s32.totalorder %s27, 0
      %p316 = por %p314, %p315
      %p317 = scmp.ne.s32.totalorder %s305, %s306
      %p318 = scmp.eq.s32.totalorder %s28, 4
      %p319 = por %p317, %p318
      %p321 = scmp.ne.s32.totalorder %s306, %s320
      %p322 = scmp.eq.s32.totalorder %s28, 0
      %p323 = por %p321, %p322
      %s325 = sadd.s32 %s324, 1
      %p328 = scmp.eq.s32.totalorder %s22, 4
      %p329 = scmp.ne.s32.totalorder %s324, %s326
      %p330 = scmp.eq.s32.totalorder %s22, 0
      %p331 = por %p329, %p330
      %p332 = scmp.ne.s32.totalorder %s324, %s326
      %p333 = scmp.eq.s32.totalorder %s27, 4
      %p334 = por %p332, %p333
      %p335 = scmp.ne.s32.totalorder %s326, %s327
      %p336 = scmp.eq.s32.totalorder %s27, 0
      %p337 = por %p335, %p336
      %p338 = scmp.ne.s32.totalorder %s326, %s327
      %p339 = scmp.eq.s32.totalorder %s28, 4
      %p340 = por %p338, %p339
      %p342 = scmp.ne.s32.totalorder %s327, %s341
      %p343 = scmp.eq.s32.totalorder %s28, 0
      %p344 = por %p342, %p343
      %s345 = ssub.s32 %s22, %s29
      %p346 = scmp.eq.s32.totalorder %s345, 0
      %s348 = sadd.s32 %s347, 1
      %s349 = scalar_select %p346, %s347, %s348
      %p352 = pneg %p346
      %p353 = scmp.eq.s32.totalorder %s22, 4
      %p354 = por %p352, %p353
      %p355 = scmp.ne.s32.totalorder %s347, %s350
      %p356 = scmp.eq.s32.totalorder %s22, 0
      %p357 = por %p355, %p356
      %p358 = scmp.ne.s32.totalorder %s347, %s350
      %p359 = scmp.eq.s32.totalorder %s27, 4
      %p360 = por %p358, %p359
      %p361 = scmp.ne.s32.totalorder %s350, %s351
      %p362 = scmp.eq.s32.totalorder %s27, 0
      %p363 = por %p361, %p362
      %p364 = scmp.ne.s32.totalorder %s350, %s351
      %p365 = scmp.eq.s32.totalorder %s28, 4
      %p366 = por %p364, %p365
      %p368 = scmp.ne.s32.totalorder %s351, %s367
      %p369 = scmp.eq.s32.totalorder %s28, 0
      %p370 = por %p368, %p369
      %p371 = scmp.le.s32.totalorder 1, %s22
      %p372 = scmp.lt.s32.totalorder %s22, 6
      %p373 = pnand %p371, %p372
      %p374 = pneg %p373
      // Predicated region
      $region9: #{node_module_forward.1} parent=5 // pred_check
        _
      $region10: #{node_module_forward.1} parent=5 // pred_check_branch
        %376 = sbr.rel (%p373) target = $region12
      $region11: #{node_module_forward.1} parent=5 // pred_region
        %s377 = ssub.s32 %s22, 1
        // Predicated region
        $region13: #{node_module_forward.1} parent=11 // pred_check
          %p378 = pneg %p43
        $region14: #{node_module_forward.1} parent=11 // pred_check_branch
          %380 = sbr.rel (%p378) target = $region16
        $region15: #{node_module_forward.1} parent=11 // pred_region
          %382 = vsyncadd [#allocation5], 0
          %s384 = sshll.u32 %s0, 4
          %s385 = int_to_ptr.vmem [resolvable:$true] %s384
          %387 = dma.vmem_to_smem %s385, 16, [#allocation4], [#allocation5]
        $region16: #{node_module_forward.1} parent=11 // pred_fallthru
          _
        // Predicated region
        $region17: #{node_module_forward.1} parent=11 // pred_check
          %p388 = pneg %p64
        $region18: #{node_module_forward.1} parent=11 // pred_check_branch
          %390 = sbr.rel (%p388) target = $region20
        $region19: #{node_module_forward.1} parent=11 // pred_region
          _
        $region20: #{node_module_forward.1} parent=11 // pred_fallthru
          _
        // Predicated region
        $region21: #{node_module_forward.1} parent=11 // pred_check
          %p391 = pneg %p85
        $region22: #{node_module_forward.1} parent=11 // pred_check_branch
          %393 = sbr.rel (%p391) target = $region24
        $region23: #{node_module_forward.1} parent=11 // pred_region
          _
        $region24: #{node_module_forward.1} parent=11 // pred_fallthru
          _
        // Predicated region
        $region25: #{node_module_forward.1} parent=11 // pred_check
          %p394 = pneg %p106
        $region26: #{node_module_forward.1} parent=11 // pred_check_branch
          %396 = sbr.rel (%p394) target = $region28
        $region27: #{node_module_forward.1} parent=11 // pred_region
          _
        $region28: #{node_module_forward.1} parent=11 // pred_fallthru
          _
        // Predicated region
        $region29: #{node_module_forward.1} parent=11 // pred_check
          %p397 = pneg %p127
        $region30: #{node_module_forward.1} parent=11 // pred_check_branch
          %399 = sbr.rel (%p397) target = $region32
        $region31: #{node_module_forward.1} parent=11 // pred_region
          _
        $region32: #{node_module_forward.1} parent=11 // pred_fallthru
          _
        // Predicated region
        $region33: #{node_module_forward.1} parent=11 // pred_check
          %p400 = pneg %p148
        $region34: #{node_module_forward.1} parent=11 // pred_check_branch
          %402 = sbr.rel (%p400) target = $region36
        $region35: #{node_module_forward.1} parent=11 // pred_region
          _
        $region36: #{node_module_forward.1} parent=11 // pred_fallthru
          _
        // Predicated region
        $region37: #{node_module_forward.1} parent=11 // pred_check
          %p403 = pneg %p169
        $region38: #{node_module_forward.1} parent=11 // pred_check_branch
          %405 = sbr.rel (%p403) target = $region40
        $region39: #{node_module_forward.1} parent=11 // pred_region
          _
        $region40: #{node_module_forward.1} parent=11 // pred_fallthru
          _
        // Predicated region
        $region41: #{node_module_forward.1} parent=11 // pred_check
          %p406 = pneg %p190
        $region42: #{node_module_forward.1} parent=11 // pred_check_branch
          %408 = sbr.rel (%p406) target = $region44
        $region43: #{node_module_forward.1} parent=11 // pred_region
          _
        $region44: #{node_module_forward.1} parent=11 // pred_fallthru
          _
        // Predicated region
        $region45: #{node_module_forward.1} parent=11 // pred_check
          %p409 = pneg %p211
        $region46: #{node_module_forward.1} parent=11 // pred_check_branch
          %411 = sbr.rel (%p409) target = $region48
        $region47: #{node_module_forward.1} parent=11 // pred_region
          _
        $region48: #{node_module_forward.1} parent=11 // pred_fallthru
          _
        // Predicated region
        $region49: #{node_module_forward.1} parent=11 // pred_check
          %p412 = pneg %p232
        $region50: #{node_module_forward.1} parent=11 // pred_check_branch
          %414 = sbr.rel (%p412) target = $region52
        $region51: #{node_module_forward.1} parent=11 // pred_region
          _
        $region52: #{node_module_forward.1} parent=11 // pred_fallthru
          _
        // Predicated region
        $region53: #{node_module_forward.1} parent=11 // pred_check
          %p415 = pneg %p253
        $region54: #{node_module_forward.1} parent=11 // pred_check_branch
          %417 = sbr.rel (%p415) target = $region56
        $region55: #{node_module_forward.1} parent=11 // pred_region
          _
        $region56: #{node_module_forward.1} parent=11 // pred_fallthru
          _
        // Predicated region
        $region57: #{node_module_forward.1} parent=11 // pred_check
          %p418 = pneg %p274
        $region58: #{node_module_forward.1} parent=11 // pred_check_branch
          %420 = sbr.rel (%p418) target = $region60
        $region59: #{node_module_forward.1} parent=11 // pred_region
          _
        $region60: #{node_module_forward.1} parent=11 // pred_fallthru
          _
        // Predicated region
        $region61: #{node_module_forward.1} parent=11 // pred_check
          %p421 = pneg %p295
        $region62: #{node_module_forward.1} parent=11 // pred_check_branch
          %423 = sbr.rel (%p421) target = $region64
        $region63: #{node_module_forward.1} parent=11 // pred_region
          _
        $region64: #{node_module_forward.1} parent=11 // pred_fallthru
          _
        // Predicated region
        $region65: #{node_module_forward.1} parent=11 // pred_check
          %p424 = pneg %p316
        $region66: #{node_module_forward.1} parent=11 // pred_check_branch
          %426 = sbr.rel (%p424) target = $region68
        $region67: #{node_module_forward.1} parent=11 // pred_region
          _
        $region68: #{node_module_forward.1} parent=11 // pred_fallthru
          _
        // Predicated region
        $region69: #{node_module_forward.1} parent=11 // pred_check
          %p427 = pneg %p337
        $region70: #{node_module_forward.1} parent=11 // pred_check_branch
          %429 = sbr.rel (%p427) target = $region72
        $region71: #{node_module_forward.1} parent=11 // pred_region
          _
        $region72: #{node_module_forward.1} parent=11 // pred_fallthru
          _
      $region12: #{node_module_forward.1} parent=5 // pred_fallthru
        _
      %p430 = scmp.lt.s32.totalorder %s22, 5
      // Predicated region
      $region73: #{node_module_forward.1} parent=5 // pred_check
        %p431 = pneg %p430
      $region74: #{node_module_forward.1} parent=5 // pred_check_branch
        %433 = sbr.rel (%p431) target = $region76
      $region75: #{node_module_forward.1} parent=5 // pred_region
        _
      $region76: #{node_module_forward.1} parent=5 // pred_fallthru
        _
      %p434 = scmp.le.s32.totalorder 1, %s22
      %p435 = scmp.lt.s32.totalorder %s22, 6
      %p436 = pnand %p434, %p435
      %p437 = pneg %p436
      // Predicated region
      $region77: #{node_module_forward.1} parent=5 // pred_check
        _
      $region78: #{node_module_forward.1} parent=5 // pred_check_branch
        %439 = sbr.rel (%p436) target = $region80
      $region79: #{node_module_forward.1} parent=5 // pred_region
        %s440 = ssub.s32 %s22, 1
        // Predicated region
        $region81: #{node_module_forward.1} parent=79 // pred_check
          %p441 = pneg %p43
        $region82: #{node_module_forward.1} parent=79 // pred_check_branch
          %443 = sbr.rel (%p441) target = $region84
        $region83: #{node_module_forward.1} parent=79 // pred_region
          %445 = dma.done [#allocation5], 16
        $region84: #{node_module_forward.1} parent=79 // pred_fallthru
          _
        %446 = sfence
        %p447 = pneg %p43
        %p448 = pneg %p40
        %p449 = pneg %p64
        %p450 = pneg %p61
        %p451 = pneg %p85
        %p452 = pneg %p82
        %p453 = pneg %p106
        %p454 = pneg %p103
        %p455 = pneg %p127
        %p456 = pneg %p124
        %p457 = pneg %p148
        %p458 = pneg %p145
        %p459 = pneg %p169
        %p460 = pneg %p166
        %p461 = pneg %p190
        %p462 = pneg %p187
        %p463 = pneg %p211
        %p464 = pneg %p208
        %p465 = pneg %p232
        %p466 = pneg %p229
        %p467 = pneg %p253
        %p468 = pneg %p250
        %p469 = pneg %p274
        %p470 = pneg %p271
        %p471 = pneg %p295
        %p472 = pneg %p292
        %p473 = pneg %p316
        %p474 = pneg %p313
        %p475 = pneg %p337
        %p476 = pneg %p334
        %p477 = pneg %p363
        %p478 = pneg %p360
        %p479 = scmp.lt.s32.totalorder %s27, 4
        %s480 = scalar_select %p479, %s27, 4
        %s481 = smul.addr %s480, 8
        %s482 = scalar_lea.vmem %s15, %s481
        %p483 = scmp.lt.s32.totalorder %s27, 4
        %s484 = scalar_select %p483, %s27, 4
        %s485 = smul.addr %s484, 8
        %s486 = scalar_lea.vmem %s15, %s485
        %p487 = scmp.eq.s32.totalorder %s27, 0
        // Predicated region
        $region85: #{node_module_forward.1} parent=79 // pred_check
          %p488 = pneg %p487
        $region86: #{node_module_forward.1} parent=79 // pred_check_branch
          %490 = sbr.rel (%p488) target = $region88
        $region87: #{node_module_forward.1} parent=79 // pred_region
          %v491 = vld [vmem:[%s2] sm:$0xff]
          %v492 = vld [vmem:[%s2 + $0x8] sm:$0xff]
          %v493 = vld [vmem:[%s3] sm:$0xff]
          %v494 = vld [vmem:[%s3 + $0x8] sm:$0xff]
          %v495 = vld [vmem:[%s3 + $0x10] sm:$0xff]
          %v496 = vld [vmem:[%s3 + $0x18] sm:$0xff]
          %v497 = vld [vmem:[%s3 + $0x20] sm:$0xff]
          %v498 = vld [vmem:[%s3 + $0x28] sm:$0xff]
          %v499 = vld [vmem:[%s3 + $0x30] sm:$0xff]
          %v500 = vld [vmem:[%s3 + $0x38] sm:$0xff]
          %v501 = vld [vmem:[%s3 + $0x40] sm:$0xff]
          %v502 = vld [vmem:[%s3 + $0x48] sm:$0xff]
          %v503 = vld [vmem:[%s3 + $0x50] sm:$0xff]
          %v504 = vld [vmem:[%s3 + $0x58] sm:$0xff]
          %v505 = vld [vmem:[%s3 + $0x60] sm:$0xff]
          %v506 = vld [vmem:[%s3 + $0x68] sm:$0xff]
          %v507 = vld [vmem:[%s3 + $0x70] sm:$0xff]
          %v508 = vld [vmem:[%s3 + $0x78] sm:$0xff]
          %v509 = vld [vmem:[%s3 + $0x80] sm:$0xff]
          %v510 = vld [vmem:[%s3 + $0x88] sm:$0xff]
          %v511 = vld [vmem:[%s3 + $0x90] sm:$0xff]
          %v512 = vld [vmem:[%s3 + $0x98] sm:$0xff]
          %v513 = vld [vmem:[%s3 + $0xa0] sm:$0xff]
          %v514 = vld [vmem:[%s3 + $0xa8] sm:$0xff]
          %v515 = vld [vmem:[%s3 + $0xb0] sm:$0xff]
          %v516 = vld [vmem:[%s3 + $0xb8] sm:$0xff]
          %v517 = vld [vmem:[%s3 + $0xc0] sm:$0xff]
          %v518 = vld [vmem:[%s3 + $0xc8] sm:$0xff]
          %v519 = vld [vmem:[%s3 + $0xd0] sm:$0xff]
          %v520 = vld [vmem:[%s3 + $0xd8] sm:$0xff]
          %v521 = vld [vmem:[%s3 + $0xe0] sm:$0xff]
          %v522 = vld [vmem:[%s3 + $0xe8] sm:$0xff]
          %v523 = vld [vmem:[%s3 + $0xf0] sm:$0xff]
          %v524 = vld [vmem:[%s3 + $0xf8] sm:$0xff]
          %v525 = vld [vmem:[%s4] sm:$0x1]
          %v527 = vperm.slane %v525, 0
          %529 = vmatpush.msra.mxu0 %v508
          %530 = vmatpush.msra.mxu0 %v507
          %531 = vmatpush.msra.mxu0 %v506
          %532 = vmatpush.msra.mxu0 %v505
          %533 = vmatpush.msra.mxu0 %v504
          %534 = vmatpush.msra.mxu0 %v503
          %535 = vmatpush.msra.mxu0 %v502
          %536 = vmatpush.msra.mxu0 %v501
          %537 = vmatpush.msra.mxu0 %v500
          %538 = vmatpush.msra.mxu0 %v499
          %539 = vmatpush.msra.mxu0 %v498
          %540 = vmatpush.msra.mxu0 %v497
          %541 = vmatpush.msra.mxu0 %v496
          %542 = vmatpush.msra.mxu0 %v495
          %543 = vmatpush.msra.mxu0 %v494
          %544 = vmatpush.msra.mxu0 %v493
          %545 = vmatmul.f32.gmra.mxu0 %v491
          %v546 = vpop.f32.mrf.mxu0
          %v547 = vadd.f32 %v527, %v546
          %548 = vdwg.mxu0
          %549 = vmatpush.msra.mxu0 %v524
          %550 = vmatpush.msra.mxu0 %v523
          %551 = vmatpush.msra.mxu0 %v522
          %552 = vmatpush.msra.mxu0 %v521
          %553 = vmatpush.msra.mxu0 %v520
          %554 = vmatpush.msra.mxu0 %v519
          %555 = vmatpush.msra.mxu0 %v518
          %556 = vmatpush.msra.mxu0 %v517
          %557 = vmatpush.msra.mxu0 %v516
          %558 = vmatpush.msra.mxu0 %v515
          %559 = vmatpush.msra.mxu0 %v514
          %560 = vmatpush.msra.mxu0 %v513
          %561 = vmatpush.msra.mxu0 %v512
          %562 = vmatpush.msra.mxu0 %v511
          %563 = vmatpush.msra.mxu0 %v510
          %564 = vmatpush.msra.mxu0 %v509
          %565 = vmatmul.f32.gmra.mxu0 %v492
          %v566 = vpop.f32.mrf.mxu0
          %v567 = vadd.f32 %v547, %v566
          %568 = vdwg.mxu0
          %vm569 = vcmask 261120
          %570 = vst.msk [vmem:[#allocation3] sm:$0xff] %vm569, %v567
          %v571 = vld [vmem:[%s1] sm:$0xff]
          %572 = vst [vmem:[#allocation2] sm:$0xff] %v571
        $region88: #{node_module_forward.1} parent=79 // pred_fallthru
          _
        %p573 = scmp.gt.s32.totalorder %s27, 0
        // Predicated region
        $region89: #{node_module_forward.1} parent=79 // pred_check
          %p574 = pneg %p573
        $region90: #{node_module_forward.1} parent=79 // pred_check_branch
          %576 = sbr.rel (%p574) target = $region92
        $region91: #{node_module_forward.1} parent=79 // pred_region
          %s577 = ssub.s32 %s27, 1
          %s578 = sld [smem:[#allocation4 + %s577]]
          %s579 = sld [smem:[#allocation4 + %s27]]
          %s580 = ssub.f32 %s579, %s578
          %v581 = vld [vmem:[#allocation2] sm:$0xff]
          %v582 = vld [vmem:[%s5] sm:$0x1]
          %v583 = vstv %s578
          %v584 = vmul.f32 %v583, %v582
          %v585 = vld [vmem:[%s6] sm:$0xff]
          %v586 = vld [vmem:[%s6 + $0x8] sm:$0xff]
          %v587 = vld [vmem:[%s6 + $0x10] sm:$0xff]
          %v588 = vld [vmem:[%s6 + $0x18] sm:$0xff]
          %v589 = vld [vmem:[%s6 + $0x20] sm:$0xff]
          %v590 = vld [vmem:[%s6 + $0x28] sm:$0xff]
          %v591 = vld [vmem:[%s6 + $0x30] sm:$0xff]
          %v592 = vld [vmem:[%s6 + $0x38] sm:$0xff]
          %v593 = vld [vmem:[%s6 + $0x40] sm:$0xff]
          %v594 = vld [vmem:[%s6 + $0x48] sm:$0xff]
          %v595 = vld [vmem:[%s6 + $0x50] sm:$0xff]
          %v596 = vld [vmem:[%s6 + $0x58] sm:$0xff]
          %v597 = vld [vmem:[%s6 + $0x60] sm:$0xff]
          %v598 = vld [vmem:[%s6 + $0x68] sm:$0xff]
          %v599 = vld [vmem:[%s6 + $0x70] sm:$0xff]
          %v600 = vld [vmem:[%s6 + $0x78] sm:$0xff]
          %601 = vmatpush.msra.mxu0 %v600
          %602 = vmatpush.msra.mxu0 %v599
          %603 = vmatpush.msra.mxu0 %v598
          %604 = vmatpush.msra.mxu0 %v597
          %605 = vmatpush.msra.mxu0 %v596
          %606 = vmatpush.msra.mxu0 %v595
          %607 = vmatpush.msra.mxu0 %v594
          %608 = vmatpush.msra.mxu0 %v593
          %609 = vmatpush.msra.mxu0 %v592
          %610 = vmatpush.msra.mxu0 %v591
          %611 = vmatpush.msra.mxu0 %v590
          %612 = vmatpush.msra.mxu0 %v589
          %613 = vmatpush.msra.mxu0 %v588
          %614 = vmatpush.msra.mxu0 %v587
          %615 = vmatpush.msra.mxu0 %v586
          %616 = vmatpush.msra.mxu0 %v585
          %617 = vmatmul.f32.gmra.mxu0 %v581
          %v618 = vpop.f32.mrf.mxu0
          %v619 = vadd.f32 0.0, %v618
          %620 = vdwg.mxu0
          %v622 = vperm.slane %v584, 0
          %v624 = vadd.f32 %v622, %v619
          %v625 = vld [vmem:[#allocation3] sm:$0xff]
          %v626 = vld [vmem:[%s7] sm:$0xff]
          %v627 = vld [vmem:[%s7 + $0x8] sm:$0xff]
          %v628 = vld [vmem:[%s7 + $0x10] sm:$0xff]
          %v629 = vld [vmem:[%s7 + $0x18] sm:$0xff]
          %vm630 = vcmask 261120
          %v632 = vsel %vm630, %v625, 0
          %634 = vmatpush.msra.mxu0 0.0
          %635 = vmatpush.msra.mxu0 0.0
          %636 = vmatpush.msra.mxu0 0.0
          %637 = vmatpush.msra.mxu0 0.0
          %638 = vmatpush.msra.mxu0 0.0
          %639 = vmatpush.msra.mxu0 0.0
          %640 = vmatpush.msra.mxu0 0.0
          %641 = vmatpush.msra.mxu0 0.0
          %642 = vmatpush.msra.mxu0 0.0
          %643 = vmatpush.msra.mxu0 0.0
          %644 = vmatpush.msra.mxu0 0.0
          %645 = vmatpush.msra.mxu0 0.0
          %646 = vmatpush.msra.mxu0 %v629
          %647 = vmatpush.msra.mxu0 %v628
          %648 = vmatpush.msra.mxu0 %v627
          %649 = vmatpush.msra.mxu0 %v626
          %650 = vmatmul.f32.gmra.mxu0 %v632
          %v651 = vpop.f32.mrf.mxu0
          %v652 = vadd.f32 0.0, %v651
          %653 = vdwg.mxu0
          %v654 = vadd.f32 %v624, %v652
          %v655 = vld [vmem:[%s8] sm:$0x1]
          %v657 = vperm.slane %v655, 0
          %v659 = vadd.f32 %v654, %v657
          %vm660 = vcmp.gt.f32.partialorder %v659, 0.0
          %v661 = vmin.f32 %v659, 0.0
          %v662 = vmul.f32 %v661, 1.442695
          %v663 = vpow.pop %v662
          %v664 = vsub.f32 %v663, 1.0
          %v665 = vsel %vm660, %v659, %v664
          %v666 = vld [vmem:[%s9] sm:$0xff]
          %v667 = vld [vmem:[%s9 + $0x8] sm:$0xff]
          %v668 = vld [vmem:[%s9 + $0x10] sm:$0xff]
          %v669 = vld [vmem:[%s9 + $0x18] sm:$0xff]
          %v670 = vld [vmem:[%s10] sm:$0x1]
          %v672 = vperm.slane %v670, 0
          %v675 = vsel %vm630, %v665, 0
          %677 = vmatpush.msra.mxu0 0.0
          %678 = vmatpush.msra.mxu0 0.0
          %679 = vmatpush.msra.mxu0 0.0
          %680 = vmatpush.msra.mxu0 0.0
          %681 = vmatpush.msra.mxu0 0.0
          %682 = vmatpush.msra.mxu0 0.0
          %683 = vmatpush.msra.mxu0 0.0
          %684 = vmatpush.msra.mxu0 0.0
          %685 = vmatpush.msra.mxu0 0.0
          %686 = vmatpush.msra.mxu0 0.0
          %687 = vmatpush.msra.mxu0 0.0
          %688 = vmatpush.msra.mxu0 0.0
          %689 = vmatpush.msra.mxu0 %v669
          %690 = vmatpush.msra.mxu0 %v668
          %691 = vmatpush.msra.mxu0 %v667
          %692 = vmatpush.msra.mxu0 %v666
          %693 = vmatmul.f32.gmra.mxu0 %v675
          %v694 = vpop.f32.mrf.mxu0
          %v695 = vadd.f32 %v672, %v694
          %696 = vdwg.mxu0
          %vm697 = vcmp.gt.f32.partialorder %v695, 0.0
          %v698 = vmin.f32 %v695, 0.0
          %v699 = vmul.f32 %v698, 1.442695
          %v700 = vpow.pop %v699
          %v701 = vsub.f32 %v700, 1.0
          %v702 = vsel %vm697, %v695, %v701
          %v703 = vld [vmem:[%s11] sm:$0xff]
          %v704 = vld [vmem:[%s11 + $0x8] sm:$0xff]
          %v705 = vld [vmem:[%s11 + $0x10] sm:$0xff]
          %v706 = vld [vmem:[%s11 + $0x18] sm:$0xff]
          %v707 = vld [vmem:[%s12] sm:$0x1]
          %v709 = vperm.slane %v707, 0
          %v712 = vsel %vm630, %v702, 0
          %714 = vmatpush.msra.mxu0 0.0
          %715 = vmatpush.msra.mxu0 0.0
          %716 = vmatpush.msra.mxu0 0.0
          %717 = vmatpush.msra.mxu0 0.0
          %718 = vmatpush.msra.mxu0 0.0
          %719 = vmatpush.msra.mxu0 0.0
          %720 = vmatpush.msra.mxu0 0.0
          %721 = vmatpush.msra.mxu0 0.0
          %722 = vmatpush.msra.mxu0 0.0
          %723 = vmatpush.msra.mxu0 0.0
          %724 = vmatpush.msra.mxu0 0.0
          %725 = vmatpush.msra.mxu0 0.0
          %726 = vmatpush.msra.mxu0 %v706
          %727 = vmatpush.msra.mxu0 %v705
          %728 = vmatpush.msra.mxu0 %v704
          %729 = vmatpush.msra.mxu0 %v703
          %730 = vmatmul.f32.gmra.mxu0 %v712
          %v731 = vpop.f32.mrf.mxu0
          %v732 = vadd.f32 %v709, %v731
          %733 = vdwg.mxu0
          %vm734 = vcmp.gt.f32.partialorder %v732, 0.0
          %v735 = vmin.f32 %v732, 0.0
          %v736 = vmul.f32 %v735, 1.442695
          %v737 = vpow.pop %v736
          %v738 = vsub.f32 %v737, 1.0
          %v739 = vsel %vm734, %v732, %v738
          %v740 = vld [vmem:[%s13] sm:$0xff]
          %v741 = vld [vmem:[%s13 + $0x8] sm:$0xff]
          %v742 = vld [vmem:[%s13 + $0x10] sm:$0xff]
          %v743 = vld [vmem:[%s13 + $0x18] sm:$0xff]
          %v744 = vld [vmem:[%s14] sm:$0x1]
          %v746 = vperm.slane %v744, 0
          %v749 = vsel %vm630, %v739, 0
          %751 = vmatpush.msra.mxu0 0.0
          %752 = vmatpush.msra.mxu0 0.0
          %753 = vmatpush.msra.mxu0 0.0
          %754 = vmatpush.msra.mxu0 0.0
          %755 = vmatpush.msra.mxu0 0.0
          %756 = vmatpush.msra.mxu0 0.0
          %757 = vmatpush.msra.mxu0 0.0
          %758 = vmatpush.msra.mxu0 0.0
          %759 = vmatpush.msra.mxu0 0.0
          %760 = vmatpush.msra.mxu0 0.0
          %761 = vmatpush.msra.mxu0 0.0
          %762 = vmatpush.msra.mxu0 0.0
          %763 = vmatpush.msra.mxu0 %v743
          %764 = vmatpush.msra.mxu0 %v742
          %765 = vmatpush.msra.mxu0 %v741
          %766 = vmatpush.msra.mxu0 %v740
          %767 = vmatmul.f32.gmra.mxu0 %v749
          %v768 = vpop.f32.mrf.mxu0
          %v769 = vadd.f32 %v746, %v768
          %770 = vdwg.mxu0
          %s771 = smul.f32 %s580, 0.5
          %s772 = sadd.f32 %s578, %s771
          %v773 = vstv %s771
          %v774 = vmul.f32 %v773, %v769
          %v775 = vadd.f32 %v581, %v774
          %v776 = vstv %s772
          %v777 = vmul.f32 %v776, %v582
          %778 = vmatpush.msra.mxu0 %v600
          %779 = vmatpush.msra.mxu0 %v599
          %780 = vmatpush.msra.mxu0 %v598
          %781 = vmatpush.msra.mxu0 %v597
          %782 = vmatpush.msra.mxu0 %v596
          %783 = vmatpush.msra.mxu0 %v595
          %784 = vmatpush.msra.mxu0 %v594
          %785 = vmatpush.msra.mxu0 %v593
          %786 = vmatpush.msra.mxu0 %v592
          %787 = vmatpush.msra.mxu0 %v591
          %788 = vmatpush.msra.mxu0 %v590
          %789 = vmatpush.msra.mxu0 %v589
          %790 = vmatpush.msra.mxu0 %v588
          %791 = vmatpush.msra.mxu0 %v587
          %792 = vmatpush.msra.mxu0 %v586
          %793 = vmatpush.msra.mxu0 %v585
          %794 = vmatmul.f32.gmra.mxu0 %v775
          %v795 = vpop.f32.mrf.mxu0
          %v796 = vadd.f32 0.0, %v795
          %797 = vdwg.mxu0
          %v799 = vperm.slane %v777, 0
          %v801 = vadd.f32 %v799, %v796
          %v802 = vadd.f32 %v801, %v652
          %v803 = vadd.f32 %v802, %v657
          %vm804 = vcmp.gt.f32.partialorder %v803, 0.0
          %v805 = vmin.f32 %v803, 0.0
          %v806 = vmul.f32 %v805, 1.442695
          %v807 = vpow.pop %v806
          %v808 = vsub.f32 %v807, 1.0
          %v809 = vsel %vm804, %v803, %v808
          %v811 = vsel %vm630, %v809, 0
          %813 = vmatpush.msra.mxu0 0.0
          %814 = vmatpush.msra.mxu0 0.0
          %815 = vmatpush.msra.mxu0 0.0
          %816 = vmatpush.msra.mxu0 0.0
          %817 = vmatpush.msra.mxu0 0.0
          %818 = vmatpush.msra.mxu0 0.0
          %819 = vmatpush.msra.mxu0 0.0
          %820 = vmatpush.msra.mxu0 0.0
          %821 = vmatpush.msra.mxu0 0.0
          %822 = vmatpush.msra.mxu0 0.0
          %823 = vmatpush.msra.mxu0 0.0
          %824 = vmatpush.msra.mxu0 0.0
          %825 = vmatpush.msra.mxu0 %v669
          %826 = vmatpush.msra.mxu0 %v668
          %827 = vmatpush.msra.mxu0 %v667
          %828 = vmatpush.msra.mxu0 %v666
          %829 = vmatmul.f32.gmra.mxu0 %v811
          %v830 = vpop.f32.mrf.mxu0
          %v831 = vadd.f32 %v672, %v830
          %832 = vdwg.mxu0
          %vm833 = vcmp.gt.f32.partialorder %v831, 0.0
          %v834 = vmin.f32 %v831, 0.0
          %v835 = vmul.f32 %v834, 1.442695
          %v836 = vpow.pop %v835
          %v837 = vsub.f32 %v836, 1.0
          %v838 = vsel %vm833, %v831, %v837
          %v840 = vsel %vm630, %v838, 0
          %842 = vmatpush.msra.mxu0 0.0
          %843 = vmatpush.msra.mxu0 0.0
          %844 = vmatpush.msra.mxu0 0.0
          %845 = vmatpush.msra.mxu0 0.0
          %846 = vmatpush.msra.mxu0 0.0
          %847 = vmatpush.msra.mxu0 0.0
          %848 = vmatpush.msra.mxu0 0.0
          %849 = vmatpush.msra.mxu0 0.0
          %850 = vmatpush.msra.mxu0 0.0
          %851 = vmatpush.msra.mxu0 0.0
          %852 = vmatpush.msra.mxu0 0.0
          %853 = vmatpush.msra.mxu0 0.0
          %854 = vmatpush.msra.mxu0 %v706
          %855 = vmatpush.msra.mxu0 %v705
          %856 = vmatpush.msra.mxu0 %v704
          %857 = vmatpush.msra.mxu0 %v703
          %858 = vmatmul.f32.gmra.mxu0 %v840
          %v859 = vpop.f32.mrf.mxu0
          %v860 = vadd.f32 %v709, %v859
          %861 = vdwg.mxu0
          %vm862 = vcmp.gt.f32.partialorder %v860, 0.0
          %v863 = vmin.f32 %v860, 0.0
          %v864 = vmul.f32 %v863, 1.442695
          %v865 = vpow.pop %v864
          %v866 = vsub.f32 %v865, 1.0
          %v867 = vsel %vm862, %v860, %v866
          %v869 = vsel %vm630, %v867, 0
          %871 = vmatpush.msra.mxu0 0.0
          %872 = vmatpush.msra.mxu0 0.0
          %873 = vmatpush.msra.mxu0 0.0
          %874 = vmatpush.msra.mxu0 0.0
          %875 = vmatpush.msra.mxu0 0.0
          %876 = vmatpush.msra.mxu0 0.0
          %877 = vmatpush.msra.mxu0 0.0
          %878 = vmatpush.msra.mxu0 0.0
          %879 = vmatpush.msra.mxu0 0.0
          %880 = vmatpush.msra.mxu0 0.0
          %881 = vmatpush.msra.mxu0 0.0
          %882 = vmatpush.msra.mxu0 0.0
          %883 = vmatpush.msra.mxu0 %v743
          %884 = vmatpush.msra.mxu0 %v742
          %885 = vmatpush.msra.mxu0 %v741
          %886 = vmatpush.msra.mxu0 %v740
          %887 = vmatmul.f32.gmra.mxu0 %v869
          %v888 = vpop.f32.mrf.mxu0
          %v889 = vadd.f32 %v746, %v888
          %890 = vdwg.mxu0
          %v891 = vmul.f32 %v773, %v889
          %v892 = vadd.f32 %v581, %v891
          %893 = vmatpush.msra.mxu0 %v600
          %894 = vmatpush.msra.mxu0 %v599
          %895 = vmatpush.msra.mxu0 %v598
          %896 = vmatpush.msra.mxu0 %v597
          %897 = vmatpush.msra.mxu0 %v596
          %898 = vmatpush.msra.mxu0 %v595
          %899 = vmatpush.msra.mxu0 %v594
          %900 = vmatpush.msra.mxu0 %v593
          %901 = vmatpush.msra.mxu0 %v592
          %902 = vmatpush.msra.mxu0 %v591
          %903 = vmatpush.msra.mxu0 %v590
          %904 = vmatpush.msra.mxu0 %v589
          %905 = vmatpush.msra.mxu0 %v588
          %906 = vmatpush.msra.mxu0 %v587
          %907 = vmatpush.msra.mxu0 %v586
          %908 = vmatpush.msra.mxu0 %v585
          %909 = vmatmul.f32.gmra.mxu0 %v892
          %v910 = vpop.f32.mrf.mxu0
          %v911 = vadd.f32 0.0, %v910
          %912 = vdwg.mxu0
          %v913 = vadd.f32 %v799, %v911
          %v914 = vadd.f32 %v913, %v652
          %v915 = vadd.f32 %v914, %v657
          %vm916 = vcmp.gt.f32.partialorder %v915, 0.0
          %v917 = vmin.f32 %v915, 0.0
          %v918 = vmul.f32 %v917, 1.442695
          %v919 = vpow.pop %v918
          %v920 = vsub.f32 %v919, 1.0
          %v921 = vsel %vm916, %v915, %v920
          %v923 = vsel %vm630, %v921, 0
          %925 = vmatpush.msra.mxu0 0.0
          %926 = vmatpush.msra.mxu0 0.0
          %927 = vmatpush.msra.mxu0 0.0
          %928 = vmatpush.msra.mxu0 0.0
          %929 = vmatpush.msra.mxu0 0.0
          %930 = vmatpush.msra.mxu0 0.0
          %931 = vmatpush.msra.mxu0 0.0
          %932 = vmatpush.msra.mxu0 0.0
          %933 = vmatpush.msra.mxu0 0.0
          %934 = vmatpush.msra.mxu0 0.0
          %935 = vmatpush.msra.mxu0 0.0
          %936 = vmatpush.msra.mxu0 0.0
          %937 = vmatpush.msra.mxu0 %v669
          %938 = vmatpush.msra.mxu0 %v668
          %939 = vmatpush.msra.mxu0 %v667
          %940 = vmatpush.msra.mxu0 %v666
          %941 = vmatmul.f32.gmra.mxu0 %v923
          %v942 = vpop.f32.mrf.mxu0
          %v943 = vadd.f32 %v672, %v942
          %944 = vdwg.mxu0
          %vm945 = vcmp.gt.f32.partialorder %v943, 0.0
          %v946 = vmin.f32 %v943, 0.0
          %v947 = vmul.f32 %v946, 1.442695
          %v948 = vpow.pop %v947
          %v949 = vsub.f32 %v948, 1.0
          %v950 = vsel %vm945, %v943, %v949
          %v952 = vsel %vm630, %v950, 0
          %954 = vmatpush.msra.mxu0 0.0
          %955 = vmatpush.msra.mxu0 0.0
          %956 = vmatpush.msra.mxu0 0.0
          %957 = vmatpush.msra.mxu0 0.0
          %958 = vmatpush.msra.mxu0 0.0
          %959 = vmatpush.msra.mxu0 0.0
          %960 = vmatpush.msra.mxu0 0.0
          %961 = vmatpush.msra.mxu0 0.0
          %962 = vmatpush.msra.mxu0 0.0
          %963 = vmatpush.msra.mxu0 0.0
          %964 = vmatpush.msra.mxu0 0.0
          %965 = vmatpush.msra.mxu0 0.0
          %966 = vmatpush.msra.mxu0 %v706
          %967 = vmatpush.msra.mxu0 %v705
          %968 = vmatpush.msra.mxu0 %v704
          %969 = vmatpush.msra.mxu0 %v703
          %970 = vmatmul.f32.gmra.mxu0 %v952
          %v971 = vpop.f32.mrf.mxu0
          %v972 = vadd.f32 %v709, %v971
          %973 = vdwg.mxu0
          %vm974 = vcmp.gt.f32.partialorder %v972, 0.0
          %v975 = vmin.f32 %v972, 0.0
          %v976 = vmul.f32 %v975, 1.442695
          %v977 = vpow.pop %v976
          %v978 = vsub.f32 %v977, 1.0
          %v979 = vsel %vm974, %v972, %v978
          %v981 = vsel %vm630, %v979, 0
          %983 = vmatpush.msra.mxu0 0.0
          %984 = vmatpush.msra.mxu0 0.0
          %985 = vmatpush.msra.mxu0 0.0
          %986 = vmatpush.msra.mxu0 0.0
          %987 = vmatpush.msra.mxu0 0.0
          %988 = vmatpush.msra.mxu0 0.0
          %989 = vmatpush.msra.mxu0 0.0
          %990 = vmatpush.msra.mxu0 0.0
          %991 = vmatpush.msra.mxu0 0.0
          %992 = vmatpush.msra.mxu0 0.0
          %993 = vmatpush.msra.mxu0 0.0
          %994 = vmatpush.msra.mxu0 0.0
          %995 = vmatpush.msra.mxu0 %v743
          %996 = vmatpush.msra.mxu0 %v742
          %997 = vmatpush.msra.mxu0 %v741
          %998 = vmatpush.msra.mxu0 %v740
          %999 = vmatmul.f32.gmra.mxu0 %v981
          %v1000 = vpop.f32.mrf.mxu0
          %v1001 = vadd.f32 %v746, %v1000
          %1002 = vdwg.mxu0
          %v1003 = vstv %s580
          %v1004 = vmul.f32 %v1003, %v1001
          %v1005 = vadd.f32 %v581, %v1004
          %v1006 = vstv %s579
          %v1007 = vmul.f32 %v1006, %v582
          %1008 = vmatpush.msra.mxu0 %v600
          %1009 = vmatpush.msra.mxu0 %v599
          %1010 = vmatpush.msra.mxu0 %v598
          %1011 = vmatpush.msra.mxu0 %v597
          %1012 = vmatpush.msra.mxu0 %v596
          %1013 = vmatpush.msra.mxu0 %v595
          %1014 = vmatpush.msra.mxu0 %v594
          %1015 = vmatpush.msra.mxu0 %v593
          %1016 = vmatpush.msra.mxu0 %v592
          %1017 = vmatpush.msra.mxu0 %v591
          %1018 = vmatpush.msra.mxu0 %v590
          %1019 = vmatpush.msra.mxu0 %v589
          %1020 = vmatpush.msra.mxu0 %v588
          %1021 = vmatpush.msra.mxu0 %v587
          %1022 = vmatpush.msra.mxu0 %v586
          %1023 = vmatpush.msra.mxu0 %v585
          %1024 = vmatmul.f32.gmra.mxu0 %v1005
          %v1025 = vpop.f32.mrf.mxu0
          %v1026 = vadd.f32 0.0, %v1025
          %1027 = vdwg.mxu0
          %v1029 = vperm.slane %v1007, 0
          %v1031 = vadd.f32 %v1029, %v1026
          %v1032 = vadd.f32 %v1031, %v652
          %v1033 = vadd.f32 %v1032, %v657
          %vm1034 = vcmp.gt.f32.partialorder %v1033, 0.0
          %v1035 = vmin.f32 %v1033, 0.0
          %v1036 = vmul.f32 %v1035, 1.442695
          %v1037 = vpow.pop %v1036
          %v1038 = vsub.f32 %v1037, 1.0
          %v1039 = vsel %vm1034, %v1033, %v1038
          %v1041 = vsel %vm630, %v1039, 0
          %1043 = vmatpush.msra.mxu0 0.0
          %1044 = vmatpush.msra.mxu0 0.0
          %1045 = vmatpush.msra.mxu0 0.0
          %1046 = vmatpush.msra.mxu0 0.0
          %1047 = vmatpush.msra.mxu0 0.0
          %1048 = vmatpush.msra.mxu0 0.0
          %1049 = vmatpush.msra.mxu0 0.0
          %1050 = vmatpush.msra.mxu0 0.0
          %1051 = vmatpush.msra.mxu0 0.0
          %1052 = vmatpush.msra.mxu0 0.0
          %1053 = vmatpush.msra.mxu0 0.0
          %1054 = vmatpush.msra.mxu0 0.0
          %1055 = vmatpush.msra.mxu0 %v669
          %1056 = vmatpush.msra.mxu0 %v668
          %1057 = vmatpush.msra.mxu0 %v667
          %1058 = vmatpush.msra.mxu0 %v666
          %1059 = vmatmul.f32.gmra.mxu0 %v1041
          %v1060 = vpop.f32.mrf.mxu0
          %v1061 = vadd.f32 %v672, %v1060
          %1062 = vdwg.mxu0
          %vm1063 = vcmp.gt.f32.partialorder %v1061, 0.0
          %v1064 = vmin.f32 %v1061, 0.0
          %v1065 = vmul.f32 %v1064, 1.442695
          %v1066 = vpow.pop %v1065
          %v1067 = vsub.f32 %v1066, 1.0
          %v1068 = vsel %vm1063, %v1061, %v1067
          %v1070 = vsel %vm630, %v1068, 0
          %1072 = vmatpush.msra.mxu0 0.0
          %1073 = vmatpush.msra.mxu0 0.0
          %1074 = vmatpush.msra.mxu0 0.0
          %1075 = vmatpush.msra.mxu0 0.0
          %1076 = vmatpush.msra.mxu0 0.0
          %1077 = vmatpush.msra.mxu0 0.0
          %1078 = vmatpush.msra.mxu0 0.0
          %1079 = vmatpush.msra.mxu0 0.0
          %1080 = vmatpush.msra.mxu0 0.0
          %1081 = vmatpush.msra.mxu0 0.0
          %1082 = vmatpush.msra.mxu0 0.0
          %1083 = vmatpush.msra.mxu0 0.0
          %1084 = vmatpush.msra.mxu0 %v706
          %1085 = vmatpush.msra.mxu0 %v705
          %1086 = vmatpush.msra.mxu0 %v704
          %1087 = vmatpush.msra.mxu0 %v703
          %1088 = vmatmul.f32.gmra.mxu0 %v1070
          %v1089 = vpop.f32.mrf.mxu0
          %v1090 = vadd.f32 %v709, %v1089
          %1091 = vdwg.mxu0
          %vm1092 = vcmp.gt.f32.partialorder %v1090, 0.0
          %v1093 = vmin.f32 %v1090, 0.0
          %v1094 = vmul.f32 %v1093, 1.442695
          %v1095 = vpow.pop %v1094
          %v1096 = vsub.f32 %v1095, 1.0
          %v1097 = vsel %vm1092, %v1090, %v1096
          %v1099 = vsel %vm630, %v1097, 0
          %1101 = vmatpush.msra.mxu0 0.0
          %1102 = vmatpush.msra.mxu0 0.0
          %1103 = vmatpush.msra.mxu0 0.0
          %1104 = vmatpush.msra.mxu0 0.0
          %1105 = vmatpush.msra.mxu0 0.0
          %1106 = vmatpush.msra.mxu0 0.0
          %1107 = vmatpush.msra.mxu0 0.0
          %1108 = vmatpush.msra.mxu0 0.0
          %1109 = vmatpush.msra.mxu0 0.0
          %1110 = vmatpush.msra.mxu0 0.0
          %1111 = vmatpush.msra.mxu0 0.0
          %1112 = vmatpush.msra.mxu0 0.0
          %1113 = vmatpush.msra.mxu0 %v743
          %1114 = vmatpush.msra.mxu0 %v742
          %1115 = vmatpush.msra.mxu0 %v741
          %1116 = vmatpush.msra.mxu0 %v740
          %1117 = vmatmul.f32.gmra.mxu0 %v1099
          %v1118 = vpop.f32.mrf.mxu0
          %v1119 = vadd.f32 %v746, %v1118
          %1120 = vdwg.mxu0
          %v1121 = vrcp.pop 6.0
          %v1122 = vmul.f32 6.0, %v1121
          %v1123 = vsub.f32 1.0, %v1122
          %v1124 = vmul.f32 %v1121, %v1123
          %v1125 = vadd.f32 %v1121, %v1124
          %vm1126 = vweird.f32 %v1121
          %v1127 = vsel %vm1126, %v1121, %v1125
          %s1128 = vtos %v1127
          %s1129 = smul.f32 %s580, %s1128
          %v1130 = vmul.f32 %v889, 2.0
          %v1131 = vadd.f32 %v769, %v1130
          %v1132 = vmul.f32 %v1001, 2.0
          %v1133 = vadd.f32 %v1131, %v1132
          %v1134 = vadd.f32 %v1133, %v1119
          %v1135 = vstv %s1129
          %v1136 = vmul.f32 %v1135, %v1134
          %v1137 = vadd.f32 %v581, %v1136
          %1138 = vst [vmem:[#allocation2] sm:$0xff] %v1137
        $region92: #{node_module_forward.1} parent=79 // pred_fallthru
          _
        %v1139 = vld [vmem:[#allocation2] sm:$0xff]
        %1140 = vst [vmem:[%s486] sm:$0xff] %v1139
        %p1141 = scmp.lt.s32.totalorder %s27, 4
        %s1142 = scalar_select %p1141, %s27, 4
        %s1143 = smul.addr %s1142, 8
        %s1144 = scalar_lea.vmem %s15, %s1143
        // Predicated region
        $region93: #{node_module_forward.1} parent=79 // pred_check
          %p1145 = pneg %p360
        $region94: #{node_module_forward.1} parent=79 // pred_check_branch
          %1147 = sbr.rel (%p1145) target = $region96
        $region95: #{node_module_forward.1} parent=79 // pred_region
          _
        $region96: #{node_module_forward.1} parent=79 // pred_fallthru
          _
      $region80: #{node_module_forward.1} parent=5 // pred_fallthru
        _
      %p1148 = scmp.le.s32.totalorder 2, %s22
      // Predicated region
      $region97: #{node_module_forward.1} parent=5 // pred_check
        %p1149 = pneg %p1148
      $region98: #{node_module_forward.1} parent=5 // pred_check_branch
        %1151 = sbr.rel (%p1149) target = $region100
      $region99: #{node_module_forward.1} parent=5 // pred_region
        %s1152 = ssub.s32 %s22, 2
        // Predicated region
        $region101: #{node_module_forward.1} parent=99 // pred_check
          %p1153 = pneg %p366
        $region102: #{node_module_forward.1} parent=99 // pred_check_branch
          %1155 = sbr.rel (%p1153) target = $region104
        $region103: #{node_module_forward.1} parent=99 // pred_region
          %p1156 = scmp.lt.s32.totalorder %s28, 4
          %s1157 = scalar_select %p1156, %s28, 4
          %s1158 = smul.addr %s1157, 8
          %s1159 = scalar_lea.vmem %s15, %s1158
        $region104: #{node_module_forward.1} parent=99 // pred_fallthru
          _
      $region100: #{node_module_forward.1} parent=5 // pred_fallthru
        _
    $region6: #{node_module_forward.1} parent=1 // loop_footer
      %s26 = sadd.s32 1, %s22
    $region7: #{node_module_forward.1} parent=1 // loop_footer_branch
      %21 = sbr.rel target = $region3
    $region8: #{node_module_forward.1} parent=1 // loop_exit
      _
    %1160 = vsyncpa [#allocation5], 1
    %s1161 = scalar_lea.sflag [#allocation5], 1
    %1162 = vsyncpa %s1161, 1

</llo_original>
